<compile_context>
chip_gen: v7x
topology: tpu7x:2x2x1
jax: 0.10.0
libtpu: 0.0.40
codegen_flags: <defaults>
</compile_context>

<pallas_src>
import functools

import jax
import jax.numpy as jnp
from jax.experimental import pallas as pl
from jax.experimental.pallas import tpu as pltpu


def lstm_kernel(x_ref, wih_ref, whh_ref, b_ref, wfc_ref, bfc_ref,
                out_ref, gx_ref, h_ref, c_ref, *, t_chunk):
    H = whh_ref.shape[0]
    G = whh_ref.shape[1]                     # 4 * H
    Bc = h_ref.shape[0]                      # batch rows in this chunk
    t_idx = pl.program_id(1)

    # --- init carried state at the first time-chunk of this batch-chunk.
    @pl.when(t_idx == 0)
    def _():
        h_ref[...] = jnp.zeros_like(h_ref)
        c_ref[...] = jnp.zeros_like(c_ref)

    # --- hoisted loop invariants.
    w_ih = wih_ref[...]                                       # [E, 4H]
    w_hh = whh_ref[...]                                       # [H, 4H]
    b_row = b_ref[...]                                        # [1, 4H]
    lane = jax.lax.broadcasted_iota(jnp.int32, (Bc, G), 1)
    is_g = jnp.logical_and(lane >= 2 * H, lane < 3 * H)       # tanh (g) lanes
    pre_scale = jnp.where(is_g, jnp.float32(1.0), jnp.float32(0.5))

    # --- h-independent input projection for the whole chunk (off the serial
    # --- chain), fused bias included exactly once.
    @pl.loop(0, t_chunk, unroll=True)
    def _(t):
        gx_ref[t] = jnp.dot(x_ref[t], w_ih,
                            preferred_element_type=jnp.float32) + b_row

    # --- serial recurrence over the chunk; h/c are loop-carried vregs.
    def step(t, carry):
        h, c = carry
        gates = gx_ref[t] + jnp.dot(h, w_hh,
                                    preferred_element_type=jnp.float32)  # [Bc,4H]
        # One tanh EUP pass; sigmoid(x) = 0.5*tanh(x/2) + 0.5 on i/f/o lanes.
        t_act = jnp.tanh(gates * pre_scale)
        acts = jnp.where(is_g, t_act, 0.5 * t_act + 0.5)
        i_g = acts[:, 0:H]
        f_g = acts[:, H:2 * H]
        g_g = acts[:, 2 * H:3 * H]
        o_g = acts[:, 3 * H:4 * H]
        c_new = f_g * c + i_g * g_g
        h_new = o_g * jnp.tanh(c_new)
        return h_new, c_new

    h_last, c_last = jax.lax.fori_loop(
        0, t_chunk, step, (h_ref[...], c_ref[...]), unroll=True)
    h_ref[...] = h_last
    c_ref[...] = c_last

    # --- final FC on the last hidden state; lane-dense [Bc, O_pad] store.
    @pl.when(t_idx == pl.num_programs(1) - 1)
    def _():
        out_ref[...] = (jnp.dot(h_last, wfc_ref[...],
                                preferred_element_type=jnp.float32)
                        + bfc_ref[...]).astype(out_ref.dtype)


def lstm_model_forward(token_ids, params, *, t_chunk=4, b_chunk=8):
    """token_ids: int32 [B, T]  ->  logits float32 [B, output_dim]"""
    emb_tbl = params["embedding"]          # [V, E]
    w_ih = params["w_ih"]                  # [E, 4H]
    w_hh = params["w_hh"]                  # [H, 4H]
    bias = params["bias"]                  # [1, 4H]  (b_ih + b_hh)
    w_fc = params["w_fc"]                  # [H, O]
    b_fc = params["b_fc"]                  # [1, O]

    B, T = token_ids.shape
    E = emb_tbl.shape[1]
    H = w_hh.shape[0]
    G = 4 * H
    O = w_fc.shape[1]

    # Batch padded to f32 sublane multiple; chunked for the parallel grid axis.
    b_chunk = max(8, -(-b_chunk // 8) * 8)
    B_pad = max(b_chunk, -(-B // b_chunk) * b_chunk)
    nb = B_pad // b_chunk

    # Time chunk must divide T (no padded LSTM steps).
    t_chunk = max(1, min(t_chunk, T))
    while T % t_chunk:
        t_chunk -= 1
    nt = T // t_chunk

    O_pad = max(128, -(-O // 128) * 128)   # lane-dense output block

    # Embedding lookup (gather glue) directly in time-major layout — only the
    # tiny token-id matrix is transposed, not the embedded activations.
    x_tbe = jnp.take(emb_tbl, token_ids.T, axis=0)           # [T, B, E]
    if B_pad != B:
        x_tbe = jnp.pad(x_tbe, ((0, 0), (0, B_pad - B), (0, 0)))

    w_fc_p = jnp.pad(w_fc, ((0, 0), (0, O_pad - O)))
    b_fc_p = jnp.pad(b_fc, ((0, 0), (0, O_pad - O)))

    grid_spec = pltpu.PrefetchScalarGridSpec(
        num_scalar_prefetch=0,
        grid=(nb, nt),
        in_specs=[
            pl.BlockSpec((t_chunk, b_chunk, E), lambda b, t: (t, b, 0)),  # x chunk
            pl.BlockSpec((E, G), lambda b, t: (0, 0)),                    # W_ih
            pl.BlockSpec((H, G), lambda b, t: (0, 0)),                    # W_hh
            pl.BlockSpec((1, G), lambda b, t: (0, 0)),                    # bias
            pl.BlockSpec((H, O_pad), lambda b, t: (0, 0)),                # W_fc
            pl.BlockSpec((1, O_pad), lambda b, t: (0, 0)),                # b_fc
        ],
        out_specs=pl.BlockSpec((b_chunk, O_pad), lambda b, t: (b, 0)),
        scratch_shapes=[
            pltpu.VMEM((t_chunk, b_chunk, G), jnp.float32),   # gx (chunk-sized)
            pltpu.VMEM((b_chunk, H), jnp.float32),            # carried h
            pltpu.VMEM((b_chunk, H), jnp.float32),            # carried c
        ],
    )

    out_pad = pl.pallas_call(
        functools.partial(lstm_kernel, t_chunk=t_chunk),
        out_shape=jax.ShapeDtypeStruct((B_pad, O_pad), jnp.float32),
        grid_spec=grid_spec,
        compiler_params=pltpu.CompilerParams(
            dimension_semantics=("parallel", "arbitrary")),
    )(x_tbe, w_ih, w_hh, bias, w_fc_p, b_fc_p)

    return out_pad[:B, :O]


def reference_forward(token_ids, params):
    """Pure-JAX reference (lax.scan) matching PyTorch LSTM semantics."""
    emb = jnp.take(params["embedding"], token_ids, axis=0)   # [B, T, E]
    H = params["w_hh"].shape[0]
    B = token_ids.shape[0]

    def step(carry, x_t):
        h, c = carry
        gates = x_t @ params["w_ih"] + h @ params["w_hh"] + params["bias"][0]
        i = jax.nn.sigmoid(gates[:, 0:H])
        f = jax.nn.sigmoid(gates[:, H:2 * H])
        g = jnp.tanh(gates[:, 2 * H:3 * H])
        o = jax.nn.sigmoid(gates[:, 3 * H:4 * H])
        c = f * c + i * g
        h = o * jnp.tanh(c)
        return (h, c), h

    h0 = jnp.zeros((B, H), jnp.float32)
    (h_last, _), _ = jax.lax.scan(step, (h0, h0), jnp.transpose(emb, (1, 0, 2)))
    return h_last @ params["w_fc"] + params["b_fc"][0]


def init_params(key, vocab_size, embedding_dim, hidden_dim, output_dim):
    ks = jax.random.split(key, 7)
    s_lstm = 1.0 / jnp.sqrt(hidden_dim)
    s_fc = 1.0 / jnp.sqrt(hidden_dim)
    return {
        "embedding": jax.random.normal(ks[0], (vocab_size, embedding_dim),
                                       jnp.float32),
        "w_ih": jax.random.uniform(ks[1], (embedding_dim, 4 * hidden_dim),
                                   jnp.float32, -s_lstm, s_lstm),
        "w_hh": jax.random.uniform(ks[2], (hidden_dim, 4 * hidden_dim),
                                   jnp.float32, -s_lstm, s_lstm),
        "bias": (jax.random.uniform(ks[3], (1, 4 * hidden_dim), jnp.float32,
                                    -s_lstm, s_lstm)
                 + jax.random.uniform(ks[4], (1, 4 * hidden_dim), jnp.float32,
                                      -s_lstm, s_lstm)),
        "w_fc": jax.random.uniform(ks[5], (hidden_dim, output_dim),
                                   jnp.float32, -s_fc, s_fc),
        "b_fc": jax.random.uniform(ks[6], (1, output_dim), jnp.float32,
                                   -s_fc, s_fc),
    }


if __name__ == "__main__":
    B, T = 2, 8
    VOCAB, EMB, HID, OUT = 32, 16, 32, 8

    key = jax.random.PRNGKey(0)
    k_tok, k_par = jax.random.split(key)
    params = init_params(k_par, VOCAB, EMB, HID, OUT)
    tokens = jax.random.randint(k_tok, (B, T), 0, VOCAB, dtype=jnp.int32)

    out = jax.block_until_ready(lstm_model_forward(tokens, params))
    ref = jax.block_until_ready(reference_forward(tokens, params))

    assert out.shape == (B, OUT)
    assert jnp.allclose(out, ref, atol=1e-4, rtol=1e-4), "mismatch vs reference"
    print("KERNEL_OK")
</pallas_src>

<mosaic_0001>
module attributes {stable_mosaic.version = 11 : i64} {
  func.func @lstm_kernel(%arg0: i32, %arg1: i32, %arg2: memref<4x8x16xf32, #tpu.memory_space<vmem>>, %arg3: memref<16x128xf32, #tpu.memory_space<vmem>>, %arg4: memref<32x128xf32, #tpu.memory_space<vmem>>, %arg5: memref<1x128xf32, #tpu.memory_space<vmem>>, %arg6: memref<32x128xf32, #tpu.memory_space<vmem>>, %arg7: memref<1x128xf32, #tpu.memory_space<vmem>>, %arg8: memref<8x128xf32, #tpu.memory_space<vmem>>, %arg9: memref<4x8x128xf32, #tpu.memory_space<vmem>>, %arg10: memref<8x32xf32, #tpu.memory_space<vmem>>, %arg11: memref<8x32xf32, #tpu.memory_space<vmem>>) attributes {dimension_semantics = [#tpu.dimension_semantics<parallel>, #tpu.dimension_semantics<arbitrary>], iteration_bounds = array<i64: 1, 2>, scalar_prefetch = 0 : i64, scratch_operands = 3 : i64, tpu.core_type = #tpu.core_type<tc>, window_params = [{transform_indices = @transform_0, window_bounds = array<i64: 4, 8, 16>}, {pipeline_mode = #tpu.pipeline_mode<synchronous>, transform_indices = @transform_1, window_bounds = array<i64: 16, 128>}, {pipeline_mode = #tpu.pipeline_mode<synchronous>, transform_indices = @transform_2, window_bounds = array<i64: 32, 128>}, {pipeline_mode = #tpu.pipeline_mode<synchronous>, transform_indices = @transform_3, window_bounds = array<i64: 1, 128>}, {pipeline_mode = #tpu.pipeline_mode<synchronous>, transform_indices = @transform_4, window_bounds = array<i64: 32, 128>}, {pipeline_mode = #tpu.pipeline_mode<synchronous>, transform_indices = @transform_5, window_bounds = array<i64: 1, 128>}, {transform_indices = @transform_6, window_bounds = array<i64: 8, 128>}]} {
    %c0_i32 = arith.constant 0 : i32
    %0 = arith.cmpi eq, %arg1, %c0_i32 : i32
    %1 = arith.extui %0 : i1 to i32
    %c0_i32_0 = arith.constant 0 : i32
    %2 = arith.cmpi ne, %1, %c0_i32_0 : i32
    scf.if %2 {
      %cst_71 = arith.constant 0.000000e+00 : f32
      %154 = vector.broadcast %cst_71 : f32 to vector<8x32xf32>
      %c0_72 = arith.constant 0 : index
      %c0_73 = arith.constant 0 : index
      %155 = vector.load %arg10[%c0_72, %c0_73] : memref<8x32xf32, #tpu.memory_space<vmem>>, vector<8x32xf32>
      tpu.vector_store %arg10[%c0_72, %c0_73], %154 {strides = array<i32>} : memref<8x32xf32, #tpu.memory_space<vmem>>, vector<8x32xf32>,
      %cst_74 = arith.constant 0.000000e+00 : f32
      %156 = vector.broadcast %cst_74 : f32 to vector<8x32xf32>
      %c0_75 = arith.constant 0 : index
      %c0_76 = arith.constant 0 : index
      %157 = vector.load %arg11[%c0_75, %c0_76] : memref<8x32xf32, #tpu.memory_space<vmem>>, vector<8x32xf32>
      tpu.vector_store %arg11[%c0_75, %c0_76], %156 {strides = array<i32>} : memref<8x32xf32, #tpu.memory_space<vmem>>, vector<8x32xf32>,
    } else {
    }
    %c0 = arith.constant 0 : index
    %c0_1 = arith.constant 0 : index
    %3 = vector.load %arg3[%c0, %c0_1] : memref<16x128xf32, #tpu.memory_space<vmem>>, vector<16x128xf32>
    %c0_2 = arith.constant 0 : index
    %c0_3 = arith.constant 0 : index
    %4 = vector.load %arg4[%c0_2, %c0_3] : memref<32x128xf32, #tpu.memory_space<vmem>>, vector<32x128xf32>
    %c0_4 = arith.constant 0 : index
    %c0_5 = arith.constant 0 : index
    %5 = vector.load %arg5[%c0_4, %c0_5] : memref<1x128xf32, #tpu.memory_space<vmem>>, vector<1x128xf32>
    %6 = tpu.iota {dimensions = array<i32: 1>} : vector<8x128xi32>
    %c64_i32 = arith.constant 64 : i32
    %7 = vector.broadcast %c64_i32 : i32 to vector<8x128xi32>
    %8 = arith.cmpi sge, %6, %7 : vector<8x128xi32>
    %c96_i32 = arith.constant 96 : i32
    %9 = vector.broadcast %c96_i32 : i32 to vector<8x128xi32>
    %10 = arith.cmpi slt, %6, %9 : vector<8x128xi32>
    %11 = arith.andi %8, %10 : vector<8x128xi1>
    %cst = arith.constant 1.000000e+00 : f32
    %cst_6 = arith.constant 5.000000e-01 : f32
    %12 = vector.broadcast %cst : f32 to vector<8x128xf32>
    %13 = vector.broadcast %cst_6 : f32 to vector<8x128xf32>
    %14 = arith.select %11, %12, %13 : vector<8x128xi1>, vector<8x128xf32>
    %c0_i32_7 = arith.constant 0 : i32
    %c1_i32 = arith.constant 1 : i32
    %15 = arith.muli %c0_i32_7, %c1_i32 : i32
    %c0_i32_8 = arith.constant 0 : i32
    %16 = arith.addi %c0_i32_8, %15 : i32
    %17 = arith.index_cast %16 : i32 to index
    %c0_9 = arith.constant 0 : index
    %c0_10 = arith.constant 0 : index
    %18 = vector.load %arg2[%17, %c0_9, %c0_10] : memref<4x8x16xf32, #tpu.memory_space<vmem>>, vector<1x8x16xf32>
    %19 = vector.shape_cast %18 : vector<1x8x16xf32> to vector<8x16xf32>
    %cst_11 = arith.constant dense<0.000000e+00> : vector<8x128xf32>
    %20 = tpu.matmul %19, %3, %cst_11 {dimension_numbers = #tpu.dot_dimension_numbers<[1], [0], [0], [1], [0, 0, 1, 1], [], []>} : vector<8x16xf32>, vector<16x128xf32>, vector<8x128xf32> -> vector<8x128xf32>
    %21 = vector.broadcast %5 : vector<1x128xf32> to vector<8x128xf32>
    %22 = arith.addf %20, %21 : vector<8x128xf32>
    %23 = arith.index_cast %16 : i32 to index
    %c0_12 = arith.constant 0 : index
    %c0_13 = arith.constant 0 : index
    %24 = vector.load %arg9[%23, %c0_12, %c0_13] : memref<4x8x128xf32, #tpu.memory_space<vmem>>, vector<1x8x128xf32>
    %25 = vector.shape_cast %24 : vector<1x8x128xf32> to vector<8x128xf32>
    %26 = vector.shape_cast %22 : vector<8x128xf32> to vector<1x8x128xf32>
    tpu.vector_store %arg9[%23, %c0_12, %c0_13], %26 {strides = array<i32>} : memref<4x8x128xf32, #tpu.memory_space<vmem>>, vector<1x8x128xf32>,
    %c1_i32_14 = arith.constant 1 : i32
    %c1_i32_15 = arith.constant 1 : i32
    %27 = arith.muli %c1_i32_14, %c1_i32_15 : i32
    %c0_i32_16 = arith.constant 0 : i32
    %28 = arith.addi %c0_i32_16, %27 : i32
    %29 = arith.index_cast %28 : i32 to index
    %c0_17 = arith.constant 0 : index
    %c0_18 = arith.constant 0 : index
    %30 = vector.load %arg2[%29, %c0_17, %c0_18] : memref<4x8x16xf32, #tpu.memory_space<vmem>>, vector<1x8x16xf32>
    %31 = vector.shape_cast %30 : vector<1x8x16xf32> to vector<8x16xf32>
    %cst_19 = arith.constant dense<0.000000e+00> : vector<8x128xf32>
    %32 = tpu.matmul %31, %3, %cst_19 {dimension_numbers = #tpu.dot_dimension_numbers<[1], [0], [0], [1], [0, 0, 1, 1], [], []>} : vector<8x16xf32>, vector<16x128xf32>, vector<8x128xf32> -> vector<8x128xf32>
    %33 = vector.broadcast %5 : vector<1x128xf32> to vector<8x128xf32>
    %34 = arith.addf %32, %33 : vector<8x128xf32>
    %35 = arith.index_cast %28 : i32 to index
    %c0_20 = arith.constant 0 : index
    %c0_21 = arith.constant 0 : index
    %36 = vector.load %arg9[%35, %c0_20, %c0_21] : memref<4x8x128xf32, #tpu.memory_space<vmem>>, vector<1x8x128xf32>
    %37 = vector.shape_cast %36 : vector<1x8x128xf32> to vector<8x128xf32>
    %38 = vector.shape_cast %34 : vector<8x128xf32> to vector<1x8x128xf32>
    tpu.vector_store %arg9[%35, %c0_20, %c0_21], %38 {strides = array<i32>} : memref<4x8x128xf32, #tpu.memory_space<vmem>>, vector<1x8x128xf32>,
    %c2_i32 = arith.constant 2 : i32
    %c1_i32_22 = arith.constant 1 : i32
    %39 = arith.muli %c2_i32, %c1_i32_22 : i32
    %c0_i32_23 = arith.constant 0 : i32
    %40 = arith.addi %c0_i32_23, %39 : i32
    %41 = arith.index_cast %40 : i32 to index
    %c0_24 = arith.constant 0 : index
    %c0_25 = arith.constant 0 : index
    %42 = vector.load %arg2[%41, %c0_24, %c0_25] : memref<4x8x16xf32, #tpu.memory_space<vmem>>, vector<1x8x16xf32>
    %43 = vector.shape_cast %42 : vector<1x8x16xf32> to vector<8x16xf32>
    %cst_26 = arith.constant dense<0.000000e+00> : vector<8x128xf32>
    %44 = tpu.matmul %43, %3, %cst_26 {dimension_numbers = #tpu.dot_dimension_numbers<[1], [0], [0], [1], [0, 0, 1, 1], [], []>} : vector<8x16xf32>, vector<16x128xf32>, vector<8x128xf32> -> vector<8x128xf32>
    %45 = vector.broadcast %5 : vector<1x128xf32> to vector<8x128xf32>
    %46 = arith.addf %44, %45 : vector<8x128xf32>
    %47 = arith.index_cast %40 : i32 to index
    %c0_27 = arith.constant 0 : index
    %c0_28 = arith.constant 0 : index
    %48 = vector.load %arg9[%47, %c0_27, %c0_28] : memref<4x8x128xf32, #tpu.memory_space<vmem>>, vector<1x8x128xf32>
    %49 = vector.shape_cast %48 : vector<1x8x128xf32> to vector<8x128xf32>
    %50 = vector.shape_cast %46 : vector<8x128xf32> to vector<1x8x128xf32>
    tpu.vector_store %arg9[%47, %c0_27, %c0_28], %50 {strides = array<i32>} : memref<4x8x128xf32, #tpu.memory_space<vmem>>, vector<1x8x128xf32>,
    %c3_i32 = arith.constant 3 : i32
    %c1_i32_29 = arith.constant 1 : i32
    %51 = arith.muli %c3_i32, %c1_i32_29 : i32
    %c0_i32_30 = arith.constant 0 : i32
    %52 = arith.addi %c0_i32_30, %51 : i32
    %53 = arith.index_cast %52 : i32 to index
    %c0_31 = arith.constant 0 : index
    %c0_32 = arith.constant 0 : index
    %54 = vector.load %arg2[%53, %c0_31, %c0_32] : memref<4x8x16xf32, #tpu.memory_space<vmem>>, vector<1x8x16xf32>
    %55 = vector.shape_cast %54 : vector<1x8x16xf32> to vector<8x16xf32>
    %cst_33 = arith.constant dense<0.000000e+00> : vector<8x128xf32>
    %56 = tpu.matmul %55, %3, %cst_33 {dimension_numbers = #tpu.dot_dimension_numbers<[1], [0], [0], [1], [0, 0, 1, 1], [], []>} : vector<8x16xf32>, vector<16x128xf32>, vector<8x128xf32> -> vector<8x128xf32>
    %57 = vector.broadcast %5 : vector<1x128xf32> to vector<8x128xf32>
    %58 = arith.addf %56, %57 : vector<8x128xf32>
    %59 = arith.index_cast %52 : i32 to index
    %c0_34 = arith.constant 0 : index
    %c0_35 = arith.constant 0 : index
    %60 = vector.load %arg9[%59, %c0_34, %c0_35] : memref<4x8x128xf32, #tpu.memory_space<vmem>>, vector<1x8x128xf32>
    %61 = vector.shape_cast %60 : vector<1x8x128xf32> to vector<8x128xf32>
    %62 = vector.shape_cast %58 : vector<8x128xf32> to vector<1x8x128xf32>
    tpu.vector_store %arg9[%59, %c0_34, %c0_35], %62 {strides = array<i32>} : memref<4x8x128xf32, #tpu.memory_space<vmem>>, vector<1x8x128xf32>,
    %c4_i32 = arith.constant 4 : i32
    %c0_36 = arith.constant 0 : index
    %c0_37 = arith.constant 0 : index
    %63 = vector.load %arg10[%c0_36, %c0_37] : memref<8x32xf32, #tpu.memory_space<vmem>>, vector<8x32xf32>
    %c0_38 = arith.constant 0 : index
    %c0_39 = arith.constant 0 : index
    %64 = vector.load %arg11[%c0_38, %c0_39] : memref<8x32xf32, #tpu.memory_space<vmem>>, vector<8x32xf32>
    %c0_i32_40 = arith.constant 0 : i32
    %65 = arith.index_cast %c0_i32_40 : i32 to index
    %c0_41 = arith.constant 0 : index
    %c0_42 = arith.constant 0 : index
    %66 = vector.load %arg9[%65, %c0_41, %c0_42] : memref<4x8x128xf32, #tpu.memory_space<vmem>>, vector<1x8x128xf32>
    %67 = vector.shape_cast %66 : vector<1x8x128xf32> to vector<8x128xf32>
    %cst_43 = arith.constant dense<0.000000e+00> : vector<8x128xf32>
    %68 = tpu.matmul %63, %4, %cst_43 {dimension_numbers = #tpu.dot_dimension_numbers<[1], [0], [0], [1], [0, 0, 1, 1], [], []>} : vector<8x32xf32>, vector<32x128xf32>, vector<8x128xf32> -> vector<8x128xf32>
    %69 = arith.addf %67, %68 : vector<8x128xf32>
    %70 = arith.mulf %69, %14 : vector<8x128xf32>
    %71 = math.tanh %70 : vector<8x128xf32>
    %cst_44 = arith.constant 5.000000e-01 : f32
    %72 = vector.broadcast %cst_44 : f32 to vector<8x128xf32>
    %73 = arith.mulf %72, %71 : vector<8x128xf32>
    %cst_45 = arith.constant 5.000000e-01 : f32
    %74 = vector.broadcast %cst_45 : f32 to vector<8x128xf32>
    %75 = arith.addf %73, %74 : vector<8x128xf32>
    %76 = arith.select %11, %71, %75 : vector<8x128xi1>, vector<8x128xf32>
    %77 = vector.extract_strided_slice %76 {offsets = [0, 0], sizes = [8, 32], strides = [1, 1]} : vector<8x128xf32> to vector<8x32xf32>
    %78 = vector.extract_strided_slice %76 {offsets = [0, 32], sizes = [8, 32], strides = [1, 1]} : vector<8x128xf32> to vector<8x32xf32>
    %79 = vector.extract_strided_slice %76 {offsets = [0, 64], sizes = [8, 32], strides = [1, 1]} : vector<8x128xf32> to vector<8x32xf32>
    %80 = vector.extract_strided_slice %76 {offsets = [0, 96], sizes = [8, 32], strides = [1, 1]} : vector<8x128xf32> to vector<8x32xf32>
    %81 = arith.mulf %78, %64 : vector<8x32xf32>
    %82 = arith.mulf %77, %79 : vector<8x32xf32>
    %83 = arith.addf %81, %82 : vector<8x32xf32>
    %84 = math.tanh %83 : vector<8x32xf32>
    %85 = arith.mulf %80, %84 : vector<8x32xf32>
    %c1_i32_46 = arith.constant 1 : i32
    %86 = arith.index_cast %c1_i32_46 : i32 to index
    %c0_47 = arith.constant 0 : index
    %c0_48 = arith.constant 0 : index
    %87 = vector.load %arg9[%86, %c0_47, %c0_48] : memref<4x8x128xf32, #tpu.memory_space<vmem>>, vector<1x8x128xf32>
    %88 = vector.shape_cast %87 : vector<1x8x128xf32> to vector<8x128xf32>
    %cst_49 = arith.constant dense<0.000000e+00> : vector<8x128xf32>
    %89 = tpu.matmul %85, %4, %cst_49 {dimension_numbers = #tpu.dot_dimension_numbers<[1], [0], [0], [1], [0, 0, 1, 1], [], []>} : vector<8x32xf32>, vector<32x128xf32>, vector<8x128xf32> -> vector<8x128xf32>
    %90 = arith.addf %88, %89 : vector<8x128xf32>
    %91 = arith.mulf %90, %14 : vector<8x128xf32>
    %92 = math.tanh %91 : vector<8x128xf32>
    %cst_50 = arith.constant 5.000000e-01 : f32
    %93 = vector.broadcast %cst_50 : f32 to vector<8x128xf32>
    %94 = arith.mulf %93, %92 : vector<8x128xf32>
    %cst_51 = arith.constant 5.000000e-01 : f32
    %95 = vector.broadcast %cst_51 : f32 to vector<8x128xf32>
    %96 = arith.addf %94, %95 : vector<8x128xf32>
    %97 = arith.select %11, %92, %96 : vector<8x128xi1>, vector<8x128xf32>
    %98 = vector.extract_strided_slice %97 {offsets = [0, 0], sizes = [8, 32], strides = [1, 1]} : vector<8x128xf32> to vector<8x32xf32>
    %99 = vector.extract_strided_slice %97 {offsets = [0, 32], sizes = [8, 32], strides = [1, 1]} : vector<8x128xf32> to vector<8x32xf32>
    %100 = vector.extract_strided_slice %97 {offsets = [0, 64], sizes = [8, 32], strides = [1, 1]} : vector<8x128xf32> to vector<8x32xf32>
    %101 = vector.extract_strided_slice %97 {offsets = [0, 96], sizes = [8, 32], strides = [1, 1]} : vector<8x128xf32> to vector<8x32xf32>
    %102 = arith.mulf %99, %83 : vector<8x32xf32>
    %103 = arith.mulf %98, %100 : vector<8x32xf32>
    %104 = arith.addf %102, %103 : vector<8x32xf32>
    %105 = math.tanh %104 : vector<8x32xf32>
    %106 = arith.mulf %101, %105 : vector<8x32xf32>
    %c2_i32_52 = arith.constant 2 : i32
    %107 = arith.index_cast %c2_i32_52 : i32 to index
    %c0_53 = arith.constant 0 : index
    %c0_54 = arith.constant 0 : index
    %108 = vector.load %arg9[%107, %c0_53, %c0_54] : memref<4x8x128xf32, #tpu.memory_space<vmem>>, vector<1x8x128xf32>
    %109 = vector.shape_cast %108 : vector<1x8x128xf32> to vector<8x128xf32>
    %cst_55 = arith.constant dense<0.000000e+00> : vector<8x128xf32>
    %110 = tpu.matmul %106, %4, %cst_55 {dimension_numbers = #tpu.dot_dimension_numbers<[1], [0], [0], [1], [0, 0, 1, 1], [], []>} : vector<8x32xf32>, vector<32x128xf32>, vector<8x128xf32> -> vector<8x128xf32>
    %111 = arith.addf %109, %110 : vector<8x128xf32>
    %112 = arith.mulf %111, %14 : vector<8x128xf32>
    %113 = math.tanh %112 : vector<8x128xf32>
    %cst_56 = arith.constant 5.000000e-01 : f32
    %114 = vector.broadcast %cst_56 : f32 to vector<8x128xf32>
    %115 = arith.mulf %114, %113 : vector<8x128xf32>
    %cst_57 = arith.constant 5.000000e-01 : f32
    %116 = vector.broadcast %cst_57 : f32 to vector<8x128xf32>
    %117 = arith.addf %115, %116 : vector<8x128xf32>
    %118 = arith.select %11, %113, %117 : vector<8x128xi1>, vector<8x128xf32>
    %119 = vector.extract_strided_slice %118 {offsets = [0, 0], sizes = [8, 32], strides = [1, 1]} : vector<8x128xf32> to vector<8x32xf32>
    %120 = vector.extract_strided_slice %118 {offsets = [0, 32], sizes = [8, 32], strides = [1, 1]} : vector<8x128xf32> to vector<8x32xf32>
    %121 = vector.extract_strided_slice %118 {offsets = [0, 64], sizes = [8, 32], strides = [1, 1]} : vector<8x128xf32> to vector<8x32xf32>
    %122 = vector.extract_strided_slice %118 {offsets = [0, 96], sizes = [8, 32], strides = [1, 1]} : vector<8x128xf32> to vector<8x32xf32>
    %123 = arith.mulf %120, %104 : vector<8x32xf32>
    %124 = arith.mulf %119, %121 : vector<8x32xf32>
    %125 = arith.addf %123, %124 : vector<8x32xf32>
    %126 = math.tanh %125 : vector<8x32xf32>
    %127 = arith.mulf %122, %126 : vector<8x32xf32>
    %c3_i32_58 = arith.constant 3 : i32
    %128 = arith.index_cast %c3_i32_58 : i32 to index
    %c0_59 = arith.constant 0 : index
    %c0_60 = arith.constant 0 : index
    %129 = vector.load %arg9[%128, %c0_59, %c0_60] : memref<4x8x128xf32, #tpu.memory_space<vmem>>, vector<1x8x128xf32>
    %130 = vector.shape_cast %129 : vector<1x8x128xf32> to vector<8x128xf32>
    %cst_61 = arith.constant dense<0.000000e+00> : vector<8x128xf32>
    %131 = tpu.matmul %127, %4, %cst_61 {dimension_numbers = #tpu.dot_dimension_numbers<[1], [0], [0], [1], [0, 0, 1, 1], [], []>} : vector<8x32xf32>, vector<32x128xf32>, vector<8x128xf32> -> vector<8x128xf32>
    %132 = arith.addf %130, %131 : vector<8x128xf32>
    %133 = arith.mulf %132, %14 : vector<8x128xf32>
    %134 = math.tanh %133 : vector<8x128xf32>
    %cst_62 = arith.constant 5.000000e-01 : f32
    %135 = vector.broadcast %cst_62 : f32 to vector<8x128xf32>
    %136 = arith.mulf %135, %134 : vector<8x128xf32>
    %cst_63 = arith.constant 5.000000e-01 : f32
    %137 = vector.broadcast %cst_63 : f32 to vector<8x128xf32>
    %138 = arith.addf %136, %137 : vector<8x128xf32>
    %139 = arith.select %11, %134, %138 : vector<8x128xi1>, vector<8x128xf32>
    %140 = vector.extract_strided_slice %139 {offsets = [0, 0], sizes = [8, 32], strides = [1, 1]} : vector<8x128xf32> to vector<8x32xf32>
    %141 = vector.extract_strided_slice %139 {offsets = [0, 32], sizes = [8, 32], strides = [1, 1]} : vector<8x128xf32> to vector<8x32xf32>
    %142 = vector.extract_strided_slice %139 {offsets = [0, 64], sizes = [8, 32], strides = [1, 1]} : vector<8x128xf32> to vector<8x32xf32>
    %143 = vector.extract_strided_slice %139 {offsets = [0, 96], sizes = [8, 32], strides = [1, 1]} : vector<8x128xf32> to vector<8x32xf32>
    %144 = arith.mulf %141, %125 : vector<8x32xf32>
    %145 = arith.mulf %140, %142 : vector<8x32xf32>
    %146 = arith.addf %144, %145 : vector<8x32xf32>
    %147 = math.tanh %146 : vector<8x32xf32>
    %148 = arith.mulf %143, %147 : vector<8x32xf32>
    %c4_i32_64 = arith.constant 4 : i32
    %c0_65 = arith.constant 0 : index
    %c0_66 = arith.constant 0 : index
    %149 = vector.load %arg10[%c0_65, %c0_66] : memref<8x32xf32, #tpu.memory_space<vmem>>, vector<8x32xf32>
    tpu.vector_store %arg10[%c0_65, %c0_66], %148 {strides = array<i32>} : memref<8x32xf32, #tpu.memory_space<vmem>>, vector<8x32xf32>,
    %c0_67 = arith.constant 0 : index
    %c0_68 = arith.constant 0 : index
    %150 = vector.load %arg11[%c0_67, %c0_68] : memref<8x32xf32, #tpu.memory_space<vmem>>, vector<8x32xf32>
    tpu.vector_store %arg11[%c0_67, %c0_68], %146 {strides = array<i32>} : memref<8x32xf32, #tpu.memory_space<vmem>>, vector<8x32xf32>,
    %c1_i32_69 = arith.constant 1 : i32
    %151 = arith.cmpi eq, %arg1, %c1_i32_69 : i32
    %152 = arith.extui %151 : i1 to i32
    %c0_i32_70 = arith.constant 0 : i32
    %153 = arith.cmpi ne, %152, %c0_i32_70 : i32
    scf.if %153 {
      %c0_71 = arith.constant 0 : index
      %c0_72 = arith.constant 0 : index
      %154 = vector.load %arg6[%c0_71, %c0_72] : memref<32x128xf32, #tpu.memory_space<vmem>>, vector<32x128xf32>
      %cst_73 = arith.constant dense<0.000000e+00> : vector<8x128xf32>
      %155 = tpu.matmul %148, %154, %cst_73 {dimension_numbers = #tpu.dot_dimension_numbers<[1], [0], [0], [1], [0, 0, 1, 1], [], []>} : vector<8x32xf32>, vector<32x128xf32>, vector<8x128xf32> -> vector<8x128xf32>
      %c0_74 = arith.constant 0 : index
      %c0_75 = arith.constant 0 : index
      %156 = vector.load %arg7[%c0_74, %c0_75] : memref<1x128xf32, #tpu.memory_space<vmem>>, vector<1x128xf32>
      %157 = vector.broadcast %156 : vector<1x128xf32> to vector<8x128xf32>
      %158 = arith.addf %155, %157 : vector<8x128xf32>
      %c0_76 = arith.constant 0 : index
      %c0_77 = arith.constant 0 : index
      %159 = vector.load %arg8[%c0_76, %c0_77] : memref<8x128xf32, #tpu.memory_space<vmem>>, vector<8x128xf32>
      tpu.vector_store %arg8[%c0_76, %c0_77], %158 {strides = array<i32>} : memref<8x128xf32, #tpu.memory_space<vmem>>, vector<8x128xf32>,
    } else {
    }
    return
  }
  func.func @transform_0(%arg0: i32, %arg1: i32) -> (i32, i32, i32) {
    %c0_i32 = arith.constant 0 : i32
    %c0_i32_0 = arith.constant 0 : i32
    return %arg1, %arg0, %c0_i32 : i32, i32, i32
  }
  func.func @transform_1(%arg0: i32, %arg1: i32) -> (i32, i32) {
    %c0_i32 = arith.constant 0 : i32
    %c0_i32_0 = arith.constant 0 : i32
    %c0_i32_1 = arith.constant 0 : i32
    return %c0_i32, %c0_i32_0 : i32, i32
  }
  func.func @transform_2(%arg0: i32, %arg1: i32) -> (i32, i32) {
    %c0_i32 = arith.constant 0 : i32
    %c0_i32_0 = arith.constant 0 : i32
    %c0_i32_1 = arith.constant 0 : i32
    return %c0_i32, %c0_i32_0 : i32, i32
  }
  func.func @transform_3(%arg0: i32, %arg1: i32) -> (i32, i32) {
    %c0_i32 = arith.constant 0 : i32
    %c0_i32_0 = arith.constant 0 : i32
    %c0_i32_1 = arith.constant 0 : i32
    return %c0_i32, %c0_i32_0 : i32, i32
  }
  func.func @transform_4(%arg0: i32, %arg1: i32) -> (i32, i32) {
    %c0_i32 = arith.constant 0 : i32
    %c0_i32_0 = arith.constant 0 : i32
    %c0_i32_1 = arith.constant 0 : i32
    return %c0_i32, %c0_i32_0 : i32, i32
  }
  func.func @transform_5(%arg0: i32, %arg1: i32) -> (i32, i32) {
    %c0_i32 = arith.constant 0 : i32
    %c0_i32_0 = arith.constant 0 : i32
    %c0_i32_1 = arith.constant 0 : i32
    return %c0_i32, %c0_i32_0 : i32, i32
  }
  func.func @transform_6(%arg0: i32, %arg1: i32) -> (i32, i32) {
    %c0_i32 = arith.constant 0 : i32
    %c0_i32_0 = arith.constant 0 : i32
    return %arg0, %c0_i32 : i32, i32
  }
}

</mosaic_0001>

<llo_original>
// kernel: tpu_custom_call.1
$region0: #{tpu_custom_call.1}
  #allocation0 [shape = 'u32[]', space=smem, size = 0x4, offset = 0x4, fixed_abs, tag = 'smem constant byte address 0x4 - core index']
  #allocation1 [shape = 'u32[144,128]{1,0:T(1,128)}', space=vmem, size = 0x12000, scoped, tag = 'internal scratch']
  #allocation2 [shape = 'f32[4,8,128]{2,1,0:T(8,128)}', space=vmem, size = 0x4000, scoped, tag = 'scratch operand']
  #allocation3 [shape = 'f32[8,32]{1,0:T(8,128)}', space=vmem, size = 0x1000, scoped, tag = 'scratch operand']
  #allocation4 [shape = 'f32[8,32]{1,0:T(8,128)}', space=vmem, size = 0x1000, scoped, tag = 'scratch operand']
  %s0 = inlined_call_operand.hbm [shape: f32[8,8,16], index: 0, kind: input, shape index: {}]
  %s1 = inlined_call_operand.hbm [shape: f32[16,128], index: 1, kind: input, shape index: {}]
  %s2 = inlined_call_operand.hbm [shape: f32[32,128], index: 2, kind: input, shape index: {}]
  %s3 = inlined_call_operand.vmem [shape: f32[1,128], index: 3, kind: input, shape index: {}]
  %s4 = inlined_call_operand.hbm [shape: f32[32,128], index: 4, kind: input, shape index: {}]
  %s5 = inlined_call_operand.vmem [shape: f32[1,128], index: 5, kind: input, shape index: {}]
  %s6 = inlined_call_operand.hbm [shape: f32[8,128], index: 6, kind: output, shape index: {}]
  %s7 = sld [smem:[#allocation0]]
  $region81: #{tpu_custom_call.1} parent=0
    _
  %s9 = ssub.s32 1, %s7
  %s10 = scalar_select 0, %s9, %s7
  $region1: #{tpu_custom_call.1} parent=0
    #allocation5 [shape = 'u8[32768]{0}', space=vmem, size = 0x8000, scoped, tag = 'input window, operand 0']
    #allocation6 [shape = 's32[2]{0}', space=sflag, size = 0x8, scoped, tag = 'scoped memory for tpu_custom_call.1']
    #allocation7 [shape = 's32[2]{0}', space=sflag, size = 0x8, scoped, tag = 'scoped memory for tpu_custom_call.1']
    #allocation8 [shape = 'u8[8192]{0}', space=vmem, size = 0x2000, scoped, tag = 'input window, operand 1, single buffered']
    #allocation9 [shape = 's32[1]{0}', space=sflag, size = 0x4, scoped, tag = 'scoped memory for tpu_custom_call.1']
    #allocation10 [shape = 'u8[16384]{0}', space=vmem, size = 0x4000, scoped, tag = 'input window, operand 2, single buffered']
    #allocation11 [shape = 'u8[16384]{0}', space=vmem, size = 0x4000, scoped, tag = 'input window, operand 4, single buffered']
    #allocation12 [shape = 's32[1]{0}', space=sflag, size = 0x4, scoped, tag = 'scoped memory for tpu_custom_call.1']
    #allocation13 [shape = 'u8[4096]{0}', space=vmem, size = 0x1000, scoped, tag = 'output window, operand 0, single buffered']
    %11 = vsyncpa [#allocation6], 0
    %s12 = scalar_lea.sflag [#allocation6], 1
    %13 = vsyncpa %s12, 0
    %14 = vsyncpa [#allocation9], 0
    %15 = vsyncpa [#allocation12], 0
    %16 = vsyncpa [#allocation7], 0
    loop: start=0, step=1, limit=4
    $region2: #{tpu_custom_call.1} parent=1 // loop_pre_header
      _
    $region3: #{tpu_custom_call.1} parent=1 // loop_header
      %s18 = sphi 0, %s22
      %p19 = scmp.ge.s32.totalorder %s18, 4
      %s25 = sphi 0, %s37
      %s26 = sphi 0, %s33
      %s27 = sphi 0, %s25
      %s28 = sphi 0, %s26
      %s29 = sphi 0, %s27
      %s30 = sphi 0, %s28
      %s42 = sphi 0, %s44
      %s45 = sphi 0, %s42
      %s46 = sphi 0, %s45
      %s62 = sphi 0, %s46
      %s66 = sphi 0, %s66
      %s68 = sphi 0, %s66
      %s69 = sphi 0, %s68
      %s83 = sphi 0, %s69
      %s87 = sphi 0, %s87
      %s89 = sphi 0, %s87
      %s90 = sphi 0, %s89
      %s104 = sphi 0, %s90
      %s108 = sphi 0, %s108
      %s110 = sphi 0, %s108
      %s111 = sphi 0, %s110
      %s125 = sphi 0, %s111
      %s129 = sphi 0, %s129
      %s131 = sphi 0, %s129
      %s132 = sphi 0, %s131
      %s146 = sphi 0, %s132
      %s150 = sphi 0, %s150
      %s152 = sphi 0, %s150
      %s153 = sphi 0, %s152
      %s167 = sphi 0, %s153
      %s173 = sphi 0, %s175
      %s176 = sphi 0, %s173
      %s177 = sphi 0, %s176
      %s193 = sphi 0, %s177
    $region4: #{tpu_custom_call.1} parent=1 // loop_header_branch
      %21 = sbr.rel (%p19) target = $region8
    $region5: #{tpu_custom_call.1} parent=1 // loop_body
      %s23 = ssub.s32 %s18, 1
      %s24 = ssub.s32 %s18, 2
      %s31 = sadd.s32 1, %s26
      %p32 = scmp.ge.s32.totalorder %s31, 2
      %s33 = scalar_select %p32, 0, %s31
      %s34 = sadd.s32 1, %s25
      %s35 = scalar_select %p32, %s34, %s25
      %p36 = scmp.ge.s32.totalorder %s35, 1
      %s37 = scalar_select %p36, 0, %s35
      %s38 = ssub.s32 %s26, %s33
      %s39 = ssub.s32 %s25, %s37
      %s40 = sor.u32 %s38, %s39
      %p41 = scmp.eq.s32.totalorder %s40, 0
      %s43 = sadd.s32 %s42, 1
      %s44 = scalar_select %p41, %s42, %s43
      %p47 = pneg %p41
      %p48 = scmp.eq.s32.totalorder %s18, 1
      %p49 = por %p47, %p48
      %p50 = scmp.ne.s32.totalorder %s42, %s45
      %p51 = scmp.eq.s32.totalorder %s18, 0
      %p52 = por %p50, %p51
      %p53 = scmp.ne.s32.totalorder %s42, %s45
      %p54 = scmp.eq.s32.totalorder %s23, 1
      %p55 = por %p53, %p54
      %p56 = scmp.ne.s32.totalorder %s45, %s46
      %p57 = scmp.eq.s32.totalorder %s23, 0
      %p58 = por %p56, %p57
      %p59 = scmp.ne.s32.totalorder %s45, %s46
      %p60 = scmp.eq.s32.totalorder %s24, 1
      %p61 = por %p59, %p60
      %p63 = scmp.ne.s32.totalorder %s46, %s62
      %p64 = scmp.eq.s32.totalorder %s24, 0
      %p65 = por %p63, %p64
      %s67 = sadd.s32 %s66, 1
      %p70 = scmp.eq.s32.totalorder %s18, 1
      %p71 = scmp.ne.s32.totalorder %s66, %s68
      %p72 = scmp.eq.s32.totalorder %s18, 0
      %p73 = por %p71, %p72
      %p74 = scmp.ne.s32.totalorder %s66, %s68
      %p75 = scmp.eq.s32.totalorder %s23, 1
      %p76 = por %p74, %p75
      %p77 = scmp.ne.s32.totalorder %s68, %s69
      %p78 = scmp.eq.s32.totalorder %s23, 0
      %p79 = por %p77, %p78
      %p80 = scmp.ne.s32.totalorder %s68, %s69
      %p81 = scmp.eq.s32.totalorder %s24, 1
      %p82 = por %p80, %p81
      %p84 = scmp.ne.s32.totalorder %s69, %s83
      %p85 = scmp.eq.s32.totalorder %s24, 0
      %p86 = por %p84, %p85
      %s88 = sadd.s32 %s87, 1
      %p91 = scmp.eq.s32.totalorder %s18, 1
      %p92 = scmp.ne.s32.totalorder %s87, %s89
      %p93 = scmp.eq.s32.totalorder %s18, 0
      %p94 = por %p92, %p93
      %p95 = scmp.ne.s32.totalorder %s87, %s89
      %p96 = scmp.eq.s32.totalorder %s23, 1
      %p97 = por %p95, %p96
      %p98 = scmp.ne.s32.totalorder %s89, %s90
      %p99 = scmp.eq.s32.totalorder %s23, 0
      %p100 = por %p98, %p99
      %p101 = scmp.ne.s32.totalorder %s89, %s90
      %p102 = scmp.eq.s32.totalorder %s24, 1
      %p103 = por %p101, %p102
      %p105 = scmp.ne.s32.totalorder %s90, %s104
      %p106 = scmp.eq.s32.totalorder %s24, 0
      %p107 = por %p105, %p106
      %s109 = sadd.s32 %s108, 1
      %p112 = scmp.eq.s32.totalorder %s18, 1
      %p113 = scmp.ne.s32.totalorder %s108, %s110
      %p114 = scmp.eq.s32.totalorder %s18, 0
      %p115 = por %p113, %p114
      %p116 = scmp.ne.s32.totalorder %s108, %s110
      %p117 = scmp.eq.s32.totalorder %s23, 1
      %p118 = por %p116, %p117
      %p119 = scmp.ne.s32.totalorder %s110, %s111
      %p120 = scmp.eq.s32.totalorder %s23, 0
      %p121 = por %p119, %p120
      %p122 = scmp.ne.s32.totalorder %s110, %s111
      %p123 = scmp.eq.s32.totalorder %s24, 1
      %p124 = por %p122, %p123
      %p126 = scmp.ne.s32.totalorder %s111, %s125
      %p127 = scmp.eq.s32.totalorder %s24, 0
      %p128 = por %p126, %p127
      %s130 = sadd.s32 %s129, 1
      %p133 = scmp.eq.s32.totalorder %s18, 1
      %p134 = scmp.ne.s32.totalorder %s129, %s131
      %p135 = scmp.eq.s32.totalorder %s18, 0
      %p136 = por %p134, %p135
      %p137 = scmp.ne.s32.totalorder %s129, %s131
      %p138 = scmp.eq.s32.totalorder %s23, 1
      %p139 = por %p137, %p138
      %p140 = scmp.ne.s32.totalorder %s131, %s132
      %p141 = scmp.eq.s32.totalorder %s23, 0
      %p142 = por %p140, %p141
      %p143 = scmp.ne.s32.totalorder %s131, %s132
      %p144 = scmp.eq.s32.totalorder %s24, 1
      %p145 = por %p143, %p144
      %p147 = scmp.ne.s32.totalorder %s132, %s146
      %p148 = scmp.eq.s32.totalorder %s24, 0
      %p149 = por %p147, %p148
      %s151 = sadd.s32 %s150, 1
      %p154 = scmp.eq.s32.totalorder %s18, 1
      %p155 = scmp.ne.s32.totalorder %s150, %s152
      %p156 = scmp.eq.s32.totalorder %s18, 0
      %p157 = por %p155, %p156
      %p158 = scmp.ne.s32.totalorder %s150, %s152
      %p159 = scmp.eq.s32.totalorder %s23, 1
      %p160 = por %p158, %p159
      %p161 = scmp.ne.s32.totalorder %s152, %s153
      %p162 = scmp.eq.s32.totalorder %s23, 0
      %p163 = por %p161, %p162
      %p164 = scmp.ne.s32.totalorder %s152, %s153
      %p165 = scmp.eq.s32.totalorder %s24, 1
      %p166 = por %p164, %p165
      %p168 = scmp.ne.s32.totalorder %s153, %s167
      %p169 = scmp.eq.s32.totalorder %s24, 0
      %p170 = por %p168, %p169
      %s171 = ssub.s32 %s25, %s37
      %p172 = scmp.eq.s32.totalorder %s171, 0
      %s174 = sadd.s32 %s173, 1
      %s175 = scalar_select %p172, %s173, %s174
      %p178 = pneg %p172
      %p179 = scmp.eq.s32.totalorder %s18, 1
      %p180 = por %p178, %p179
      %p181 = scmp.ne.s32.totalorder %s173, %s176
      %p182 = scmp.eq.s32.totalorder %s18, 0
      %p183 = por %p181, %p182
      %p184 = scmp.ne.s32.totalorder %s173, %s176
      %p185 = scmp.eq.s32.totalorder %s23, 1
      %p186 = por %p184, %p185
      %p187 = scmp.ne.s32.totalorder %s176, %s177
      %p188 = scmp.eq.s32.totalorder %s23, 0
      %p189 = por %p187, %p188
      %p190 = scmp.ne.s32.totalorder %s176, %s177
      %p191 = scmp.eq.s32.totalorder %s24, 1
      %p192 = por %p190, %p191
      %p194 = scmp.ne.s32.totalorder %s177, %s193
      %p195 = scmp.eq.s32.totalorder %s24, 0
      %p196 = por %p194, %p195
      %p197 = scmp.le.s32.totalorder 1, %s18
      %p198 = scmp.lt.s32.totalorder %s18, 3
      %p199 = pnand %p197, %p198
      %p200 = pneg %p199
      // Predicated region
      $region9: #{tpu_custom_call.1} parent=5 // pred_check
        _
      $region10: #{tpu_custom_call.1} parent=5 // pred_check_branch
        %202 = sbr.rel (%p199) target = $region12
      $region11: #{tpu_custom_call.1} parent=5 // pred_region
        %s203 = ssub.s32 %s18, 1
        // Predicated region
        $region13: #{tpu_custom_call.1} parent=11 // pred_check
          %p204 = pneg %p79
        $region14: #{tpu_custom_call.1} parent=11 // pred_check_branch
          %206 = sbr.rel (%p204) target = $region16
        $region15: #{tpu_custom_call.1} parent=11 // pred_region
          %s208 = ssub.s32 256, 256
          %209 = vsyncadd [#allocation9], %s208
          %s210 = sshll.u32 [#allocation8], 4
          %s211 = int_to_ptr.vmem [resolvable:$true] %s210
          %216 = dma.hbm_to_vmem [thread:$0]  %s1, 256, %s211, [#allocation9], 128, 128, 8
        $region16: #{tpu_custom_call.1} parent=11 // pred_fallthru
          _
        // Predicated region
        $region17: #{tpu_custom_call.1} parent=11 // pred_check
          %p217 = pneg %p100
        $region18: #{tpu_custom_call.1} parent=11 // pred_check_branch
          %219 = sbr.rel (%p217) target = $region20
        $region19: #{tpu_custom_call.1} parent=11 // pred_region
          %s221 = ssub.s32 512, 512
          %222 = vsyncadd [#allocation9], %s221
          %s223 = sshll.u32 [#allocation10], 4
          %s224 = int_to_ptr.vmem [resolvable:$true] %s223
          %229 = dma.hbm_to_vmem [thread:$0]  %s2, 512, %s224, [#allocation9], 128, 128, 8
        $region20: #{tpu_custom_call.1} parent=11 // pred_fallthru
          _
        // Predicated region
        $region21: #{tpu_custom_call.1} parent=11 // pred_check
          %p230 = pneg %p121
        $region22: #{tpu_custom_call.1} parent=11 // pred_check_branch
          %232 = sbr.rel (%p230) target = $region24
        $region23: #{tpu_custom_call.1} parent=11 // pred_region
          _
        $region24: #{tpu_custom_call.1} parent=11 // pred_fallthru
          _
        // Predicated region
        $region25: #{tpu_custom_call.1} parent=11 // pred_check
          %p233 = pneg %p142
        $region26: #{tpu_custom_call.1} parent=11 // pred_check_branch
          %235 = sbr.rel (%p233) target = $region28
        $region27: #{tpu_custom_call.1} parent=11 // pred_region
          %s237 = ssub.s32 512, 512
          %238 = vsyncadd [#allocation12], %s237
          %s239 = sshll.u32 [#allocation11], 4
          %s240 = int_to_ptr.vmem [resolvable:$true] %s239
          %245 = dma.hbm_to_vmem [thread:$0]  %s4, 512, %s240, [#allocation12], 128, 128, 8
        $region28: #{tpu_custom_call.1} parent=11 // pred_fallthru
          _
        // Predicated region
        $region29: #{tpu_custom_call.1} parent=11 // pred_check
          %p246 = pneg %p163
        $region30: #{tpu_custom_call.1} parent=11 // pred_check_branch
          %248 = sbr.rel (%p246) target = $region32
        $region31: #{tpu_custom_call.1} parent=11 // pred_region
          _
        $region32: #{tpu_custom_call.1} parent=11 // pred_fallthru
          _
      $region12: #{tpu_custom_call.1} parent=5 // pred_fallthru
        _
      %p249 = scmp.lt.s32.totalorder %s18, 2
      // Predicated region
      $region33: #{tpu_custom_call.1} parent=5 // pred_check
        %p250 = pneg %p249
      $region34: #{tpu_custom_call.1} parent=5 // pred_check_branch
        %252 = sbr.rel (%p250) target = $region36
      $region35: #{tpu_custom_call.1} parent=5 // pred_region
        // Predicated region
        $region37: #{tpu_custom_call.1} parent=35 // pred_check
          %p253 = pneg %p52
        $region38: #{tpu_custom_call.1} parent=35 // pred_check_branch
          %255 = sbr.rel (%p253) target = $region40
        $region39: #{tpu_custom_call.1} parent=35 // pred_region
          %s256 = sand.u32 %s42, 1
          %s257 = scalar_lea.sflag [#allocation6], %s256
          %s258 = sand.u32 %s42, 1
          %s259 = smul.addr %s258, 32
          %s260 = scalar_lea.vmem [#allocation5], %s259
          %s261 = smul.u32 4, %s26
          %s263 = ssub.s32 512, 512
          %264 = vsyncadd %s257, %s263
          %s265 = sadd.s32 %s25, %s261
          %s266 = smul.addr %s265, 128
          %s267 = scalar_lea.hbm %s0, %s266
          %s268 = sshll.u32 %s260, 4
          %s269 = int_to_ptr.vmem [resolvable:$true] %s268
          %274 = dma.hbm_to_vmem [thread:$0]  %s267, 512, %s269, %s257, 128, 128, 8
        $region40: #{tpu_custom_call.1} parent=35 // pred_fallthru
          _
      $region36: #{tpu_custom_call.1} parent=5 // pred_fallthru
        _
      %p275 = scmp.le.s32.totalorder 1, %s18
      %p276 = scmp.lt.s32.totalorder %s18, 3
      %p277 = pnand %p275, %p276
      %p278 = pneg %p277
      // Predicated region
      $region41: #{tpu_custom_call.1} parent=5 // pred_check
        _
      $region42: #{tpu_custom_call.1} parent=5 // pred_check_branch
        %280 = sbr.rel (%p277) target = $region44
      $region43: #{tpu_custom_call.1} parent=5 // pred_region
        %s281 = ssub.s32 %s18, 1
        %s282 = sand.u32 %s45, 1
        %s283 = scalar_lea.sflag [#allocation6], %s282
        %s284 = sand.u32 %s45, 1
        %s285 = smul.addr %s284, 32
        %s286 = scalar_lea.vmem [#allocation5], %s285
        // Predicated region
        $region45: #{tpu_custom_call.1} parent=43 // pred_check
          %p287 = pneg %p58
        $region46: #{tpu_custom_call.1} parent=43 // pred_check_branch
          %289 = sbr.rel (%p287) target = $region48
        $region47: #{tpu_custom_call.1} parent=43 // pred_region
          %290 = dma.done %s283, 512
        $region48: #{tpu_custom_call.1} parent=43 // pred_fallthru
          _
        // Predicated region
        $region49: #{tpu_custom_call.1} parent=43 // pred_check
          %p291 = pneg %p79
        $region50: #{tpu_custom_call.1} parent=43 // pred_check_branch
          %293 = sbr.rel (%p291) target = $region52
        $region51: #{tpu_custom_call.1} parent=43 // pred_region
          %294 = dma.done [#allocation9], 256
        $region52: #{tpu_custom_call.1} parent=43 // pred_fallthru
          _
        // Predicated region
        $region53: #{tpu_custom_call.1} parent=43 // pred_check
          %p295 = pneg %p100
        $region54: #{tpu_custom_call.1} parent=43 // pred_check_branch
          %297 = sbr.rel (%p295) target = $region56
        $region55: #{tpu_custom_call.1} parent=43 // pred_region
          %298 = dma.done [#allocation9], 512
        $region56: #{tpu_custom_call.1} parent=43 // pred_fallthru
          _
        // Predicated region
        $region57: #{tpu_custom_call.1} parent=43 // pred_check
          %p299 = pneg %p142
        $region58: #{tpu_custom_call.1} parent=43 // pred_check_branch
          %301 = sbr.rel (%p299) target = $region60
        $region59: #{tpu_custom_call.1} parent=43 // pred_region
          %302 = dma.done [#allocation12], 512
        $region60: #{tpu_custom_call.1} parent=43 // pred_fallthru
          _
        %s303 = sand.u32 %s45, 1
        %s304 = scalar_lea.sflag [#allocation6], %s303
        %s305 = sand.u32 %s45, 1
        %s306 = smul.addr %s305, 32
        %s307 = scalar_lea.vmem [#allocation5], %s306
        %p308 = pneg %p58
        %p309 = pneg %p55
        %p310 = pneg %p79
        %p311 = pneg %p76
        %p312 = pneg %p100
        %p313 = pneg %p97
        %p314 = pneg %p121
        %p315 = pneg %p118
        %p316 = pneg %p142
        %p317 = pneg %p139
        %p318 = pneg %p163
        %p319 = pneg %p160
        %p320 = pneg %p189
        %p321 = pneg %p186
        %s322 = smul.u32 4, %s28
        %p323 = scmp.eq.s32.totalorder %s28, 0
        // Predicated region
        $region61: #{tpu_custom_call.1} parent=43 // pred_check
          %p324 = pneg %p323
        $region62: #{tpu_custom_call.1} parent=43 // pred_check_branch
          %326 = sbr.rel (%p324) target = $region64
        $region63: #{tpu_custom_call.1} parent=43 // pred_region
          %vm327 = vcmask 261120
          %328 = vst.msk [vmem:[#allocation3] sm:$0xff] %vm327, 0.0
          %329 = vst.msk [vmem:[#allocation4] sm:$0xff] %vm327, 0.0
        $region64: #{tpu_custom_call.1} parent=43 // pred_fallthru
          _
        %v330 = vld [vmem:[#allocation8] sm:$0xff]
        %v331 = vld [vmem:[#allocation8 + $0x8] sm:$0xff]
        %v332 = vld [vmem:[#allocation10] sm:$0xff]
        %v333 = vld [vmem:[#allocation10 + $0x8] sm:$0xff]
        %v334 = vld [vmem:[#allocation10 + $0x10] sm:$0xff]
        %v335 = vld [vmem:[#allocation10 + $0x18] sm:$0xff]
        %v336 = vld [vmem:[%s3] sm:$0x1]
        %v337 = vlaneseq
        %v338 = vand.u32 %v337, 127
        %vm339 = vcmp.ge.s32.totalorder %v338, 64
        %vm340 = vcmp.lt.s32.totalorder %v338, 96
        %vm341 = vmand %vm339, %vm340
        %v342 = vsel %vm341, 1.0, 0.5
        %v343 = vld [vmem:[%s286] sm:$0xff]
        %v345 = vlaneseq
        %v346 = vshrl.u32 %v345, 7
        %v347 = vsub.s32 0, %v346
        %v348 = vrot.slane %v336, %v347
        %vm350 = vcmask 130048
        %v352 = vsel %vm350, %v343, 0
        %354 = vmatprep.subr.mxu0 0.0
        %355 = vmatpush1.msra.mxu0 %v330
        %356 = vmatprep.subr.mxu0 0.0
        %357 = vmatpush1.msra.mxu0 %v331
        %358 = vmatprep.subr.mxu0 0.0
        %359 = vmatpush1.msra.mxu0 0.0
        %360 = vmatprep.subr.mxu0 0.0
        %361 = vmatpush1.msra.mxu0 0.0
        %362 = vmatprep.subr.mxu0 0.0
        %363 = vmatpush1.msra.mxu0 0.0
        %364 = vmatprep.subr.mxu0 0.0
        %365 = vmatpush1.msra.mxu0 0.0
        %366 = vmatprep.subr.mxu0 0.0
        %367 = vmatpush1.msra.mxu0 0.0
        %368 = vmatprep.subr.mxu0 0.0
        %369 = vmatpush1.msra.mxu0 0.0
        %370 = vmatprep.subr.mxu0 0.0
        %371 = vmatpush1.msra.mxu0 0.0
        %372 = vmatprep.subr.mxu0 0.0
        %373 = vmatpush1.msra.mxu0 0.0
        %374 = vmatprep.subr.mxu0 0.0
        %375 = vmatpush1.msra.mxu0 0.0
        %376 = vmatprep.subr.mxu0 0.0
        %377 = vmatpush1.msra.mxu0 0.0
        %378 = vmatprep.subr.mxu0 0.0
        %379 = vmatpush1.msra.mxu0 0.0
        %380 = vmatprep.subr.mxu0 0.0
        %381 = vmatpush1.msra.mxu0 0.0
        %382 = vmatprep.subr.mxu0 0.0
        %383 = vmatpush1.msra.mxu0 0.0
        %384 = vmatprep.subr.mxu0 0.0
        %385 = vmatpush1.msra.mxu0 0.0
        %386 = vmatprep.subr.mxu0 0.0
        %387 = vmatpush1.msra.mxu0 0.0
        %388 = vmatprep.subr.mxu0 0.0
        %389 = vmatpush1.msra.mxu0 0.0
        %390 = vmatprep.subr.mxu0 0.0
        %391 = vmatpush1.msra.mxu0 0.0
        %392 = vmatprep.subr.mxu0 0.0
        %393 = vmatpush1.msra.mxu0 0.0
        %394 = vmatprep.subr.mxu0 0.0
        %395 = vmatpush1.msra.mxu0 0.0
        %396 = vmatprep.subr.mxu0 0.0
        %397 = vmatpush1.msra.mxu0 0.0
        %398 = vmatprep.subr.mxu0 0.0
        %399 = vmatpush1.msra.mxu0 0.0
        %400 = vmatprep.subr.mxu0 0.0
        %401 = vmatpush1.msra.mxu0 0.0
        %402 = vmatprep.subr.mxu0 0.0
        %403 = vmatpush1.msra.mxu0 0.0
        %404 = vmatprep.subr.mxu0 0.0
        %405 = vmatpush1.msra.mxu0 0.0
        %406 = vmatprep.subr.mxu0 0.0
        %407 = vmatpush1.msra.mxu0 0.0
        %408 = vmatprep.subr.mxu0 0.0
        %409 = vmatpush1.msra.mxu0 0.0
        %410 = vmatprep.subr.mxu0 0.0
        %411 = vmatpush1.msra.mxu0 0.0
        %412 = vmatprep.subr.mxu0 0.0
        %413 = vmatpush1.msra.mxu0 0.0
        %414 = vmatprep.subr.mxu0 0.0
        %415 = vmatpush1.msra.mxu0 0.0
        %416 = vmatprep.subr.mxu0 0.0
        %417 = vmatpush1.msra.mxu0 0.0
        %418 = vmatprep.mubr.f32.mxu0 0.0
        %419 = vmatmul.mubr.f32.gmra.mrb[0].mxu0 %v352
        %v420 = vpop.f32.mrb[0].mxu0
        %v421 = vadd.f32 %v348, %v420
        %v422 = vpop.f32.mrb[0].mxu0
        %423 = vdwg.mxu0
        %424 = vst [vmem:[#allocation2] sm:$0xff] %v421
        %s425 = scalar_lea.vmem %s286, 8 [#allocation5]
        %v426 = vld [vmem:[%s425] sm:$0xff]
        %v428 = vsel %vm350, %v426, 0
        %430 = vmatprep.subr.mxu0 0.0
        %431 = vmatpush1.msra.mxu0 %v330
        %432 = vmatprep.subr.mxu0 0.0
        %433 = vmatpush1.msra.mxu0 %v331
        %434 = vmatprep.subr.mxu0 0.0
        %435 = vmatpush1.msra.mxu0 0.0
        %436 = vmatprep.subr.mxu0 0.0
        %437 = vmatpush1.msra.mxu0 0.0
        %438 = vmatprep.subr.mxu0 0.0
        %439 = vmatpush1.msra.mxu0 0.0
        %440 = vmatprep.subr.mxu0 0.0
        %441 = vmatpush1.msra.mxu0 0.0
        %442 = vmatprep.subr.mxu0 0.0
        %443 = vmatpush1.msra.mxu0 0.0
        %444 = vmatprep.subr.mxu0 0.0
        %445 = vmatpush1.msra.mxu0 0.0
        %446 = vmatprep.subr.mxu0 0.0
        %447 = vmatpush1.msra.mxu0 0.0
        %448 = vmatprep.subr.mxu0 0.0
        %449 = vmatpush1.msra.mxu0 0.0
        %450 = vmatprep.subr.mxu0 0.0
        %451 = vmatpush1.msra.mxu0 0.0
        %452 = vmatprep.subr.mxu0 0.0
        %453 = vmatpush1.msra.mxu0 0.0
        %454 = vmatprep.subr.mxu0 0.0
        %455 = vmatpush1.msra.mxu0 0.0
        %456 = vmatprep.subr.mxu0 0.0
        %457 = vmatpush1.msra.mxu0 0.0
        %458 = vmatprep.subr.mxu0 0.0
        %459 = vmatpush1.msra.mxu0 0.0
        %460 = vmatprep.subr.mxu0 0.0
        %461 = vmatpush1.msra.mxu0 0.0
        %462 = vmatprep.subr.mxu0 0.0
        %463 = vmatpush1.msra.mxu0 0.0
        %464 = vmatprep.subr.mxu0 0.0
        %465 = vmatpush1.msra.mxu0 0.0
        %466 = vmatprep.subr.mxu0 0.0
        %467 = vmatpush1.msra.mxu0 0.0
        %468 = vmatprep.subr.mxu0 0.0
        %469 = vmatpush1.msra.mxu0 0.0
        %470 = vmatprep.subr.mxu0 0.0
        %471 = vmatpush1.msra.mxu0 0.0
        %472 = vmatprep.subr.mxu0 0.0
        %473 = vmatpush1.msra.mxu0 0.0
        %474 = vmatprep.subr.mxu0 0.0
        %475 = vmatpush1.msra.mxu0 0.0
        %476 = vmatprep.subr.mxu0 0.0
        %477 = vmatpush1.msra.mxu0 0.0
        %478 = vmatprep.subr.mxu0 0.0
        %479 = vmatpush1.msra.mxu0 0.0
        %480 = vmatprep.subr.mxu0 0.0
        %481 = vmatpush1.msra.mxu0 0.0
        %482 = vmatprep.subr.mxu0 0.0
        %483 = vmatpush1.msra.mxu0 0.0
        %484 = vmatprep.subr.mxu0 0.0
        %485 = vmatpush1.msra.mxu0 0.0
        %486 = vmatprep.subr.mxu0 0.0
        %487 = vmatpush1.msra.mxu0 0.0
        %488 = vmatprep.subr.mxu0 0.0
        %489 = vmatpush1.msra.mxu0 0.0
        %490 = vmatprep.subr.mxu0 0.0
        %491 = vmatpush1.msra.mxu0 0.0
        %492 = vmatprep.subr.mxu0 0.0
        %493 = vmatpush1.msra.mxu0 0.0
        %494 = vmatprep.mubr.f32.mxu0 0.0
        %495 = vmatmul.mubr.f32.gmra.mrb[0].mxu0 %v428
        %v496 = vpop.f32.mrb[0].mxu0
        %v497 = vadd.f32 %v348, %v496
        %v498 = vpop.f32.mrb[0].mxu0
        %499 = vdwg.mxu0
        %s500 = scalar_lea.vmem [#allocation2], 8
        %501 = vst [vmem:[%s500] sm:$0xff] %v497
        %s502 = scalar_lea.vmem %s286, 16 [#allocation5]
        %v503 = vld [vmem:[%s502] sm:$0xff]
        %v505 = vsel %vm350, %v503, 0
        %507 = vmatprep.subr.mxu0 0.0
        %508 = vmatpush1.msra.mxu0 %v330
        %509 = vmatprep.subr.mxu0 0.0
        %510 = vmatpush1.msra.mxu0 %v331
        %511 = vmatprep.subr.mxu0 0.0
        %512 = vmatpush1.msra.mxu0 0.0
        %513 = vmatprep.subr.mxu0 0.0
        %514 = vmatpush1.msra.mxu0 0.0
        %515 = vmatprep.subr.mxu0 0.0
        %516 = vmatpush1.msra.mxu0 0.0
        %517 = vmatprep.subr.mxu0 0.0
        %518 = vmatpush1.msra.mxu0 0.0
        %519 = vmatprep.subr.mxu0 0.0
        %520 = vmatpush1.msra.mxu0 0.0
        %521 = vmatprep.subr.mxu0 0.0
        %522 = vmatpush1.msra.mxu0 0.0
        %523 = vmatprep.subr.mxu0 0.0
        %524 = vmatpush1.msra.mxu0 0.0
        %525 = vmatprep.subr.mxu0 0.0
        %526 = vmatpush1.msra.mxu0 0.0
        %527 = vmatprep.subr.mxu0 0.0
        %528 = vmatpush1.msra.mxu0 0.0
        %529 = vmatprep.subr.mxu0 0.0
        %530 = vmatpush1.msra.mxu0 0.0
        %531 = vmatprep.subr.mxu0 0.0
        %532 = vmatpush1.msra.mxu0 0.0
        %533 = vmatprep.subr.mxu0 0.0
        %534 = vmatpush1.msra.mxu0 0.0
        %535 = vmatprep.subr.mxu0 0.0
        %536 = vmatpush1.msra.mxu0 0.0
        %537 = vmatprep.subr.mxu0 0.0
        %538 = vmatpush1.msra.mxu0 0.0
        %539 = vmatprep.subr.mxu0 0.0
        %540 = vmatpush1.msra.mxu0 0.0
        %541 = vmatprep.subr.mxu0 0.0
        %542 = vmatpush1.msra.mxu0 0.0
        %543 = vmatprep.subr.mxu0 0.0
        %544 = vmatpush1.msra.mxu0 0.0
        %545 = vmatprep.subr.mxu0 0.0
        %546 = vmatpush1.msra.mxu0 0.0
        %547 = vmatprep.subr.mxu0 0.0
        %548 = vmatpush1.msra.mxu0 0.0
        %549 = vmatprep.subr.mxu0 0.0
        %550 = vmatpush1.msra.mxu0 0.0
        %551 = vmatprep.subr.mxu0 0.0
        %552 = vmatpush1.msra.mxu0 0.0
        %553 = vmatprep.subr.mxu0 0.0
        %554 = vmatpush1.msra.mxu0 0.0
        %555 = vmatprep.subr.mxu0 0.0
        %556 = vmatpush1.msra.mxu0 0.0
        %557 = vmatprep.subr.mxu0 0.0
        %558 = vmatpush1.msra.mxu0 0.0
        %559 = vmatprep.subr.mxu0 0.0
        %560 = vmatpush1.msra.mxu0 0.0
        %561 = vmatprep.subr.mxu0 0.0
        %562 = vmatpush1.msra.mxu0 0.0
        %563 = vmatprep.subr.mxu0 0.0
        %564 = vmatpush1.msra.mxu0 0.0
        %565 = vmatprep.subr.mxu0 0.0
        %566 = vmatpush1.msra.mxu0 0.0
        %567 = vmatprep.subr.mxu0 0.0
        %568 = vmatpush1.msra.mxu0 0.0
        %569 = vmatprep.subr.mxu0 0.0
        %570 = vmatpush1.msra.mxu0 0.0
        %571 = vmatprep.mubr.f32.mxu0 0.0
        %572 = vmatmul.mubr.f32.gmra.mrb[0].mxu0 %v505
        %v573 = vpop.f32.mrb[0].mxu0
        %v574 = vadd.f32 %v348, %v573
        %v575 = vpop.f32.mrb[0].mxu0
        %576 = vdwg.mxu0
        %s577 = scalar_lea.vmem [#allocation2], 16
        %578 = vst [vmem:[%s577] sm:$0xff] %v574
        %s579 = scalar_lea.vmem %s286, 24 [#allocation5]
        %v580 = vld [vmem:[%s579] sm:$0xff]
        %v582 = vsel %vm350, %v580, 0
        %584 = vmatprep.subr.mxu0 0.0
        %585 = vmatpush1.msra.mxu0 %v330
        %586 = vmatprep.subr.mxu0 0.0
        %587 = vmatpush1.msra.mxu0 %v331
        %588 = vmatprep.subr.mxu0 0.0
        %589 = vmatpush1.msra.mxu0 0.0
        %590 = vmatprep.subr.mxu0 0.0
        %591 = vmatpush1.msra.mxu0 0.0
        %592 = vmatprep.subr.mxu0 0.0
        %593 = vmatpush1.msra.mxu0 0.0
        %594 = vmatprep.subr.mxu0 0.0
        %595 = vmatpush1.msra.mxu0 0.0
        %596 = vmatprep.subr.mxu0 0.0
        %597 = vmatpush1.msra.mxu0 0.0
        %598 = vmatprep.subr.mxu0 0.0
        %599 = vmatpush1.msra.mxu0 0.0
        %600 = vmatprep.subr.mxu0 0.0
        %601 = vmatpush1.msra.mxu0 0.0
        %602 = vmatprep.subr.mxu0 0.0
        %603 = vmatpush1.msra.mxu0 0.0
        %604 = vmatprep.subr.mxu0 0.0
        %605 = vmatpush1.msra.mxu0 0.0
        %606 = vmatprep.subr.mxu0 0.0
        %607 = vmatpush1.msra.mxu0 0.0
        %608 = vmatprep.subr.mxu0 0.0
        %609 = vmatpush1.msra.mxu0 0.0
        %610 = vmatprep.subr.mxu0 0.0
        %611 = vmatpush1.msra.mxu0 0.0
        %612 = vmatprep.subr.mxu0 0.0
        %613 = vmatpush1.msra.mxu0 0.0
        %614 = vmatprep.subr.mxu0 0.0
        %615 = vmatpush1.msra.mxu0 0.0
        %616 = vmatprep.subr.mxu0 0.0
        %617 = vmatpush1.msra.mxu0 0.0
        %618 = vmatprep.subr.mxu0 0.0
        %619 = vmatpush1.msra.mxu0 0.0
        %620 = vmatprep.subr.mxu0 0.0
        %621 = vmatpush1.msra.mxu0 0.0
        %622 = vmatprep.subr.mxu0 0.0
        %623 = vmatpush1.msra.mxu0 0.0
        %624 = vmatprep.subr.mxu0 0.0
        %625 = vmatpush1.msra.mxu0 0.0
        %626 = vmatprep.subr.mxu0 0.0
        %627 = vmatpush1.msra.mxu0 0.0
        %628 = vmatprep.subr.mxu0 0.0
        %629 = vmatpush1.msra.mxu0 0.0
        %630 = vmatprep.subr.mxu0 0.0
        %631 = vmatpush1.msra.mxu0 0.0
        %632 = vmatprep.subr.mxu0 0.0
        %633 = vmatpush1.msra.mxu0 0.0
        %634 = vmatprep.subr.mxu0 0.0
        %635 = vmatpush1.msra.mxu0 0.0
        %636 = vmatprep.subr.mxu0 0.0
        %637 = vmatpush1.msra.mxu0 0.0
        %638 = vmatprep.subr.mxu0 0.0
        %639 = vmatpush1.msra.mxu0 0.0
        %640 = vmatprep.subr.mxu0 0.0
        %641 = vmatpush1.msra.mxu0 0.0
        %642 = vmatprep.subr.mxu0 0.0
        %643 = vmatpush1.msra.mxu0 0.0
        %644 = vmatprep.subr.mxu0 0.0
        %645 = vmatpush1.msra.mxu0 0.0
        %646 = vmatprep.subr.mxu0 0.0
        %647 = vmatpush1.msra.mxu0 0.0
        %648 = vmatprep.mubr.f32.mxu0 0.0
        %649 = vmatmul.mubr.f32.gmra.mrb[0].mxu0 %v582
        %v650 = vpop.f32.mrb[0].mxu0
        %v651 = vadd.f32 %v348, %v650
        %v652 = vpop.f32.mrb[0].mxu0
        %653 = vdwg.mxu0
        %s654 = scalar_lea.vmem [#allocation2], 24
        %655 = vst [vmem:[%s654] sm:$0xff] %v651
        %v656 = vld [vmem:[#allocation3] sm:$0xff]
        %v657 = vld [vmem:[#allocation4] sm:$0xff]
        %v658 = vld [vmem:[#allocation2] sm:$0xff]
        %vm659 = vcmask 261120
        %v661 = vsel %vm659, %v656, 0
        %663 = vmatprep.subr.mxu0 0.0
        %664 = vmatpush1.msra.mxu0 %v332
        %665 = vmatprep.subr.mxu0 0.0
        %666 = vmatpush1.msra.mxu0 %v333
        %667 = vmatprep.subr.mxu0 0.0
        %668 = vmatpush1.msra.mxu0 %v334
        %669 = vmatprep.subr.mxu0 0.0
        %670 = vmatpush1.msra.mxu0 %v335
        %671 = vmatprep.subr.mxu0 0.0
        %672 = vmatpush1.msra.mxu0 0.0
        %673 = vmatprep.subr.mxu0 0.0
        %674 = vmatpush1.msra.mxu0 0.0
        %675 = vmatprep.subr.mxu0 0.0
        %676 = vmatpush1.msra.mxu0 0.0
        %677 = vmatprep.subr.mxu0 0.0
        %678 = vmatpush1.msra.mxu0 0.0
        %679 = vmatprep.subr.mxu0 0.0
        %680 = vmatpush1.msra.mxu0 0.0
        %681 = vmatprep.subr.mxu0 0.0
        %682 = vmatpush1.msra.mxu0 0.0
        %683 = vmatprep.subr.mxu0 0.0
        %684 = vmatpush1.msra.mxu0 0.0
        %685 = vmatprep.subr.mxu0 0.0
        %686 = vmatpush1.msra.mxu0 0.0
        %687 = vmatprep.subr.mxu0 0.0
        %688 = vmatpush1.msra.mxu0 0.0
        %689 = vmatprep.subr.mxu0 0.0
        %690 = vmatpush1.msra.mxu0 0.0
        %691 = vmatprep.subr.mxu0 0.0
        %692 = vmatpush1.msra.mxu0 0.0
        %693 = vmatprep.subr.mxu0 0.0
        %694 = vmatpush1.msra.mxu0 0.0
        %695 = vmatprep.subr.mxu0 0.0
        %696 = vmatpush1.msra.mxu0 0.0
        %697 = vmatprep.subr.mxu0 0.0
        %698 = vmatpush1.msra.mxu0 0.0
        %699 = vmatprep.subr.mxu0 0.0
        %700 = vmatpush1.msra.mxu0 0.0
        %701 = vmatprep.subr.mxu0 0.0
        %702 = vmatpush1.msra.mxu0 0.0
        %703 = vmatprep.subr.mxu0 0.0
        %704 = vmatpush1.msra.mxu0 0.0
        %705 = vmatprep.subr.mxu0 0.0
        %706 = vmatpush1.msra.mxu0 0.0
        %707 = vmatprep.subr.mxu0 0.0
        %708 = vmatpush1.msra.mxu0 0.0
        %709 = vmatprep.subr.mxu0 0.0
        %710 = vmatpush1.msra.mxu0 0.0
        %711 = vmatprep.subr.mxu0 0.0
        %712 = vmatpush1.msra.mxu0 0.0
        %713 = vmatprep.subr.mxu0 0.0
        %714 = vmatpush1.msra.mxu0 0.0
        %715 = vmatprep.subr.mxu0 0.0
        %716 = vmatpush1.msra.mxu0 0.0
        %717 = vmatprep.subr.mxu0 0.0
        %718 = vmatpush1.msra.mxu0 0.0
        %719 = vmatprep.subr.mxu0 0.0
        %720 = vmatpush1.msra.mxu0 0.0
        %721 = vmatprep.subr.mxu0 0.0
        %722 = vmatpush1.msra.mxu0 0.0
        %723 = vmatprep.subr.mxu0 0.0
        %724 = vmatpush1.msra.mxu0 0.0
        %725 = vmatprep.subr.mxu0 0.0
        %726 = vmatpush1.msra.mxu0 0.0
        %727 = vmatprep.mubr.f32.mxu0 0.0
        %728 = vmatmul.mubr.f32.gmra.mrb[0].mxu0 %v661
        %v729 = vpop.f32.mrb[0].mxu0
        %v730 = vadd.f32 0.0, %v729
        %v731 = vpop.f32.mrb[0].mxu0
        %732 = vdwg.mxu0
        %v733 = vadd.f32 %v658, %v730
        %v734 = vmul.f32 %v733, %v342
        %v735 = vtanh.pop %v734
        %v736 = vmul.f32 %v735, 0.5
        %v737 = vadd.f32 %v736, 0.5
        %v738 = vsel %vm341, %v735, %v737
        %740 = vrot.lane.b32.xlu0 %v657, 32
        %v741 = vpop.permute.xlu0 %740
        %v743 = vmul.f32 %v738, %v741
        %745 = vrot.lane.b32.xlu0 %v738, 64
        %v746 = vpop.permute.xlu0 %745
        %v748 = vmul.f32 %v738, %v746
        %750 = vrot.lane.b32.xlu0 %v748, 32
        %v751 = vpop.permute.xlu0 %750
        %v753 = vadd.f32 %v743, %v751
        %v754 = vtanh.pop %v753
        %756 = vrot.lane.b32.xlu0 %v754, 64
        %v757 = vpop.permute.xlu0 %756
        %v759 = vmul.f32 %v738, %v757
        %v760 = vld [vmem:[%s500] sm:$0xff]
        %762 = vrot.lane.b32.xlu0 %v759, 32
        %v763 = vpop.permute.xlu0 %762
        %v764 = vsel %vm659, %v763, 0
        %766 = vmatprep.subr.mxu0 0.0
        %767 = vmatpush1.msra.mxu0 %v332
        %768 = vmatprep.subr.mxu0 0.0
        %769 = vmatpush1.msra.mxu0 %v333
        %770 = vmatprep.subr.mxu0 0.0
        %771 = vmatpush1.msra.mxu0 %v334
        %772 = vmatprep.subr.mxu0 0.0
        %773 = vmatpush1.msra.mxu0 %v335
        %774 = vmatprep.subr.mxu0 0.0
        %775 = vmatpush1.msra.mxu0 0.0
        %776 = vmatprep.subr.mxu0 0.0
        %777 = vmatpush1.msra.mxu0 0.0
        %778 = vmatprep.subr.mxu0 0.0
        %779 = vmatpush1.msra.mxu0 0.0
        %780 = vmatprep.subr.mxu0 0.0
        %781 = vmatpush1.msra.mxu0 0.0
        %782 = vmatprep.subr.mxu0 0.0
        %783 = vmatpush1.msra.mxu0 0.0
        %784 = vmatprep.subr.mxu0 0.0
        %785 = vmatpush1.msra.mxu0 0.0
        %786 = vmatprep.subr.mxu0 0.0
        %787 = vmatpush1.msra.mxu0 0.0
        %788 = vmatprep.subr.mxu0 0.0
        %789 = vmatpush1.msra.mxu0 0.0
        %790 = vmatprep.subr.mxu0 0.0
        %791 = vmatpush1.msra.mxu0 0.0
        %792 = vmatprep.subr.mxu0 0.0
        %793 = vmatpush1.msra.mxu0 0.0
        %794 = vmatprep.subr.mxu0 0.0
        %795 = vmatpush1.msra.mxu0 0.0
        %796 = vmatprep.subr.mxu0 0.0
        %797 = vmatpush1.msra.mxu0 0.0
        %798 = vmatprep.subr.mxu0 0.0
        %799 = vmatpush1.msra.mxu0 0.0
        %800 = vmatprep.subr.mxu0 0.0
        %801 = vmatpush1.msra.mxu0 0.0
        %802 = vmatprep.subr.mxu0 0.0
        %803 = vmatpush1.msra.mxu0 0.0
        %804 = vmatprep.subr.mxu0 0.0
        %805 = vmatpush1.msra.mxu0 0.0
        %806 = vmatprep.subr.mxu0 0.0
        %807 = vmatpush1.msra.mxu0 0.0
        %808 = vmatprep.subr.mxu0 0.0
        %809 = vmatpush1.msra.mxu0 0.0
        %810 = vmatprep.subr.mxu0 0.0
        %811 = vmatpush1.msra.mxu0 0.0
        %812 = vmatprep.subr.mxu0 0.0
        %813 = vmatpush1.msra.mxu0 0.0
        %814 = vmatprep.subr.mxu0 0.0
        %815 = vmatpush1.msra.mxu0 0.0
        %816 = vmatprep.subr.mxu0 0.0
        %817 = vmatpush1.msra.mxu0 0.0
        %818 = vmatprep.subr.mxu0 0.0
        %819 = vmatpush1.msra.mxu0 0.0
        %820 = vmatprep.subr.mxu0 0.0
        %821 = vmatpush1.msra.mxu0 0.0
        %822 = vmatprep.subr.mxu0 0.0
        %823 = vmatpush1.msra.mxu0 0.0
        %824 = vmatprep.subr.mxu0 0.0
        %825 = vmatpush1.msra.mxu0 0.0
        %826 = vmatprep.subr.mxu0 0.0
        %827 = vmatpush1.msra.mxu0 0.0
        %828 = vmatprep.subr.mxu0 0.0
        %829 = vmatpush1.msra.mxu0 0.0
        %830 = vmatprep.mubr.f32.mxu0 0.0
        %831 = vmatmul.mubr.f32.gmra.mrb[0].mxu0 %v764
        %v832 = vpop.f32.mrb[0].mxu0
        %v833 = vadd.f32 0.0, %v832
        %v834 = vpop.f32.mrb[0].mxu0
        %835 = vdwg.mxu0
        %v836 = vadd.f32 %v760, %v833
        %v837 = vmul.f32 %v836, %v342
        %v838 = vtanh.pop %v837
        %v839 = vmul.f32 %v838, 0.5
        %v840 = vadd.f32 %v839, 0.5
        %v841 = vsel %vm341, %v838, %v840
        %v842 = vmul.f32 %v841, %v753
        %844 = vrot.lane.b32.xlu0 %v841, 64
        %v845 = vpop.permute.xlu0 %844
        %v847 = vmul.f32 %v841, %v845
        %849 = vrot.lane.b32.xlu0 %v847, 32
        %v850 = vpop.permute.xlu0 %849
        %v852 = vadd.f32 %v842, %v850
        %v853 = vtanh.pop %v852
        %855 = vrot.lane.b32.xlu0 %v853, 64
        %v856 = vpop.permute.xlu0 %855
        %v858 = vmul.f32 %v841, %v856
        %v859 = vld [vmem:[%s577] sm:$0xff]
        %861 = vrot.lane.b32.xlu0 %v858, 32
        %v862 = vpop.permute.xlu0 %861
        %v863 = vsel %vm659, %v862, 0
        %865 = vmatprep.subr.mxu0 0.0
        %866 = vmatpush1.msra.mxu0 %v332
        %867 = vmatprep.subr.mxu0 0.0
        %868 = vmatpush1.msra.mxu0 %v333
        %869 = vmatprep.subr.mxu0 0.0
        %870 = vmatpush1.msra.mxu0 %v334
        %871 = vmatprep.subr.mxu0 0.0
        %872 = vmatpush1.msra.mxu0 %v335
        %873 = vmatprep.subr.mxu0 0.0
        %874 = vmatpush1.msra.mxu0 0.0
        %875 = vmatprep.subr.mxu0 0.0
        %876 = vmatpush1.msra.mxu0 0.0
        %877 = vmatprep.subr.mxu0 0.0
        %878 = vmatpush1.msra.mxu0 0.0
        %879 = vmatprep.subr.mxu0 0.0
        %880 = vmatpush1.msra.mxu0 0.0
        %881 = vmatprep.subr.mxu0 0.0
        %882 = vmatpush1.msra.mxu0 0.0
        %883 = vmatprep.subr.mxu0 0.0
        %884 = vmatpush1.msra.mxu0 0.0
        %885 = vmatprep.subr.mxu0 0.0
        %886 = vmatpush1.msra.mxu0 0.0
        %887 = vmatprep.subr.mxu0 0.0
        %888 = vmatpush1.msra.mxu0 0.0
        %889 = vmatprep.subr.mxu0 0.0
        %890 = vmatpush1.msra.mxu0 0.0
        %891 = vmatprep.subr.mxu0 0.0
        %892 = vmatpush1.msra.mxu0 0.0
        %893 = vmatprep.subr.mxu0 0.0
        %894 = vmatpush1.msra.mxu0 0.0
        %895 = vmatprep.subr.mxu0 0.0
        %896 = vmatpush1.msra.mxu0 0.0
        %897 = vmatprep.subr.mxu0 0.0
        %898 = vmatpush1.msra.mxu0 0.0
        %899 = vmatprep.subr.mxu0 0.0
        %900 = vmatpush1.msra.mxu0 0.0
        %901 = vmatprep.subr.mxu0 0.0
        %902 = vmatpush1.msra.mxu0 0.0
        %903 = vmatprep.subr.mxu0 0.0
        %904 = vmatpush1.msra.mxu0 0.0
        %905 = vmatprep.subr.mxu0 0.0
        %906 = vmatpush1.msra.mxu0 0.0
        %907 = vmatprep.subr.mxu0 0.0
        %908 = vmatpush1.msra.mxu0 0.0
        %909 = vmatprep.subr.mxu0 0.0
        %910 = vmatpush1.msra.mxu0 0.0
        %911 = vmatprep.subr.mxu0 0.0
        %912 = vmatpush1.msra.mxu0 0.0
        %913 = vmatprep.subr.mxu0 0.0
        %914 = vmatpush1.msra.mxu0 0.0
        %915 = vmatprep.subr.mxu0 0.0
        %916 = vmatpush1.msra.mxu0 0.0
        %917 = vmatprep.subr.mxu0 0.0
        %918 = vmatpush1.msra.mxu0 0.0
        %919 = vmatprep.subr.mxu0 0.0
        %920 = vmatpush1.msra.mxu0 0.0
        %921 = vmatprep.subr.mxu0 0.0
        %922 = vmatpush1.msra.mxu0 0.0
        %923 = vmatprep.subr.mxu0 0.0
        %924 = vmatpush1.msra.mxu0 0.0
        %925 = vmatprep.subr.mxu0 0.0
        %926 = vmatpush1.msra.mxu0 0.0
        %927 = vmatprep.subr.mxu0 0.0
        %928 = vmatpush1.msra.mxu0 0.0
        %929 = vmatprep.mubr.f32.mxu0 0.0
        %930 = vmatmul.mubr.f32.gmra.mrb[0].mxu0 %v863
        %v931 = vpop.f32.mrb[0].mxu0
        %v932 = vadd.f32 0.0, %v931
        %v933 = vpop.f32.mrb[0].mxu0
        %934 = vdwg.mxu0
        %v935 = vadd.f32 %v859, %v932
        %v936 = vmul.f32 %v935, %v342
        %v937 = vtanh.pop %v936
        %v938 = vmul.f32 %v937, 0.5
        %v939 = vadd.f32 %v938, 0.5
        %v940 = vsel %vm341, %v937, %v939
        %v941 = vmul.f32 %v940, %v852
        %943 = vrot.lane.b32.xlu0 %v940, 64
        %v944 = vpop.permute.xlu0 %943
        %v946 = vmul.f32 %v940, %v944
        %948 = vrot.lane.b32.xlu0 %v946, 32
        %v949 = vpop.permute.xlu0 %948
        %v951 = vadd.f32 %v941, %v949
        %v952 = vtanh.pop %v951
        %954 = vrot.lane.b32.xlu0 %v952, 64
        %v955 = vpop.permute.xlu0 %954
        %v957 = vmul.f32 %v940, %v955
        %v958 = vld [vmem:[%s654] sm:$0xff]
        %960 = vrot.lane.b32.xlu0 %v957, 32
        %v961 = vpop.permute.xlu0 %960
        %v962 = vsel %vm659, %v961, 0
        %964 = vmatprep.subr.mxu0 0.0
        %965 = vmatpush1.msra.mxu0 %v332
        %966 = vmatprep.subr.mxu0 0.0
        %967 = vmatpush1.msra.mxu0 %v333
        %968 = vmatprep.subr.mxu0 0.0
        %969 = vmatpush1.msra.mxu0 %v334
        %970 = vmatprep.subr.mxu0 0.0
        %971 = vmatpush1.msra.mxu0 %v335
        %972 = vmatprep.subr.mxu0 0.0
        %973 = vmatpush1.msra.mxu0 0.0
        %974 = vmatprep.subr.mxu0 0.0
        %975 = vmatpush1.msra.mxu0 0.0
        %976 = vmatprep.subr.mxu0 0.0
        %977 = vmatpush1.msra.mxu0 0.0
        %978 = vmatprep.subr.mxu0 0.0
        %979 = vmatpush1.msra.mxu0 0.0
        %980 = vmatprep.subr.mxu0 0.0
        %981 = vmatpush1.msra.mxu0 0.0
        %982 = vmatprep.subr.mxu0 0.0
        %983 = vmatpush1.msra.mxu0 0.0
        %984 = vmatprep.subr.mxu0 0.0
        %985 = vmatpush1.msra.mxu0 0.0
        %986 = vmatprep.subr.mxu0 0.0
        %987 = vmatpush1.msra.mxu0 0.0
        %988 = vmatprep.subr.mxu0 0.0
        %989 = vmatpush1.msra.mxu0 0.0
        %990 = vmatprep.subr.mxu0 0.0
        %991 = vmatpush1.msra.mxu0 0.0
        %992 = vmatprep.subr.mxu0 0.0
        %993 = vmatpush1.msra.mxu0 0.0
        %994 = vmatprep.subr.mxu0 0.0
        %995 = vmatpush1.msra.mxu0 0.0
        %996 = vmatprep.subr.mxu0 0.0
        %997 = vmatpush1.msra.mxu0 0.0
        %998 = vmatprep.subr.mxu0 0.0
        %999 = vmatpush1.msra.mxu0 0.0
        %1000 = vmatprep.subr.mxu0 0.0
        %1001 = vmatpush1.msra.mxu0 0.0
        %1002 = vmatprep.subr.mxu0 0.0
        %1003 = vmatpush1.msra.mxu0 0.0
        %1004 = vmatprep.subr.mxu0 0.0
        %1005 = vmatpush1.msra.mxu0 0.0
        %1006 = vmatprep.subr.mxu0 0.0
        %1007 = vmatpush1.msra.mxu0 0.0
        %1008 = vmatprep.subr.mxu0 0.0
        %1009 = vmatpush1.msra.mxu0 0.0
        %1010 = vmatprep.subr.mxu0 0.0
        %1011 = vmatpush1.msra.mxu0 0.0
        %1012 = vmatprep.subr.mxu0 0.0
        %1013 = vmatpush1.msra.mxu0 0.0
        %1014 = vmatprep.subr.mxu0 0.0
        %1015 = vmatpush1.msra.mxu0 0.0
        %1016 = vmatprep.subr.mxu0 0.0
        %1017 = vmatpush1.msra.mxu0 0.0
        %1018 = vmatprep.subr.mxu0 0.0
        %1019 = vmatpush1.msra.mxu0 0.0
        %1020 = vmatprep.subr.mxu0 0.0
        %1021 = vmatpush1.msra.mxu0 0.0
        %1022 = vmatprep.subr.mxu0 0.0
        %1023 = vmatpush1.msra.mxu0 0.0
        %1024 = vmatprep.subr.mxu0 0.0
        %1025 = vmatpush1.msra.mxu0 0.0
        %1026 = vmatprep.subr.mxu0 0.0
        %1027 = vmatpush1.msra.mxu0 0.0
        %1028 = vmatprep.mubr.f32.mxu0 0.0
        %1029 = vmatmul.mubr.f32.gmra.mrb[0].mxu0 %v962
        %v1030 = vpop.f32.mrb[0].mxu0
        %v1031 = vadd.f32 0.0, %v1030
        %v1032 = vpop.f32.mrb[0].mxu0
        %1033 = vdwg.mxu0
        %v1034 = vadd.f32 %v958, %v1031
        %v1035 = vmul.f32 %v1034, %v342
        %v1036 = vtanh.pop %v1035
        %v1037 = vmul.f32 %v1036, 0.5
        %v1038 = vadd.f32 %v1037, 0.5
        %v1039 = vsel %vm341, %v1036, %v1038
        %v1040 = vmul.f32 %v1039, %v951
        %1042 = vrot.lane.b32.xlu0 %v1039, 64
        %v1043 = vpop.permute.xlu0 %1042
        %v1045 = vmul.f32 %v1039, %v1043
        %1047 = vrot.lane.b32.xlu0 %v1045, 32
        %v1048 = vpop.permute.xlu0 %1047
        %v1050 = vadd.f32 %v1040, %v1048
        %v1051 = vtanh.pop %v1050
        %1053 = vrot.lane.b32.xlu0 %v1051, 64
        %v1054 = vpop.permute.xlu0 %1053
        %v1056 = vmul.f32 %v1039, %v1054
        %1058 = vrot.lane.b32.xlu0 %v1056, 32
        %v1059 = vpop.permute.xlu0 %1058
        %1061 = vst.msk [vmem:[#allocation3] sm:$0xff] %vm659, %v1059
        %1063 = vrot.lane.b32.xlu0 %v1050, 96
        %v1064 = vpop.permute.xlu0 %1063
        %1066 = vst.msk [vmem:[#allocation4] sm:$0xff] %vm659, %v1064
        %p1067 = scmp.eq.s32.totalorder %s28, 1
        // Predicated region
        $region65: #{tpu_custom_call.1} parent=43 // pred_check
          %p1068 = pneg %p1067
        $region66: #{tpu_custom_call.1} parent=43 // pred_check_branch
          %1070 = sbr.rel (%p1068) target = $region68
        $region67: #{tpu_custom_call.1} parent=43 // pred_region
          %v1071 = vld [vmem:[#allocation11] sm:$0xff]
          %v1072 = vld [vmem:[#allocation11 + $0x8] sm:$0xff]
          %v1073 = vld [vmem:[#allocation11 + $0x10] sm:$0xff]
          %v1074 = vld [vmem:[#allocation11 + $0x18] sm:$0xff]
          %v1075 = vld [vmem:[%s5] sm:$0x1]
          %v1077 = vlaneseq
          %v1078 = vshrl.u32 %v1077, 7
          %v1079 = vsub.s32 0, %v1078
          %v1080 = vrot.slane %v1075, %v1079
          %v1082 = vsel %vm659, %v1059, 0
          %1084 = vmatprep.subr.mxu0 0.0
          %1085 = vmatpush1.msra.mxu0 %v1071
          %1086 = vmatprep.subr.mxu0 0.0
          %1087 = vmatpush1.msra.mxu0 %v1072
          %1088 = vmatprep.subr.mxu0 0.0
          %1089 = vmatpush1.msra.mxu0 %v1073
          %1090 = vmatprep.subr.mxu0 0.0
          %1091 = vmatpush1.msra.mxu0 %v1074
          %1092 = vmatprep.subr.mxu0 0.0
          %1093 = vmatpush1.msra.mxu0 0.0
          %1094 = vmatprep.subr.mxu0 0.0
          %1095 = vmatpush1.msra.mxu0 0.0
          %1096 = vmatprep.subr.mxu0 0.0
          %1097 = vmatpush1.msra.mxu0 0.0
          %1098 = vmatprep.subr.mxu0 0.0
          %1099 = vmatpush1.msra.mxu0 0.0
          %1100 = vmatprep.subr.mxu0 0.0
          %1101 = vmatpush1.msra.mxu0 0.0
          %1102 = vmatprep.subr.mxu0 0.0
          %1103 = vmatpush1.msra.mxu0 0.0
          %1104 = vmatprep.subr.mxu0 0.0
          %1105 = vmatpush1.msra.mxu0 0.0
          %1106 = vmatprep.subr.mxu0 0.0
          %1107 = vmatpush1.msra.mxu0 0.0
          %1108 = vmatprep.subr.mxu0 0.0
          %1109 = vmatpush1.msra.mxu0 0.0
          %1110 = vmatprep.subr.mxu0 0.0
          %1111 = vmatpush1.msra.mxu0 0.0
          %1112 = vmatprep.subr.mxu0 0.0
          %1113 = vmatpush1.msra.mxu0 0.0
          %1114 = vmatprep.subr.mxu0 0.0
          %1115 = vmatpush1.msra.mxu0 0.0
          %1116 = vmatprep.subr.mxu0 0.0
          %1117 = vmatpush1.msra.mxu0 0.0
          %1118 = vmatprep.subr.mxu0 0.0
          %1119 = vmatpush1.msra.mxu0 0.0
          %1120 = vmatprep.subr.mxu0 0.0
          %1121 = vmatpush1.msra.mxu0 0.0
          %1122 = vmatprep.subr.mxu0 0.0
          %1123 = vmatpush1.msra.mxu0 0.0
          %1124 = vmatprep.subr.mxu0 0.0
          %1125 = vmatpush1.msra.mxu0 0.0
          %1126 = vmatprep.subr.mxu0 0.0
          %1127 = vmatpush1.msra.mxu0 0.0
          %1128 = vmatprep.subr.mxu0 0.0
          %1129 = vmatpush1.msra.mxu0 0.0
          %1130 = vmatprep.subr.mxu0 0.0
          %1131 = vmatpush1.msra.mxu0 0.0
          %1132 = vmatprep.subr.mxu0 0.0
          %1133 = vmatpush1.msra.mxu0 0.0
          %1134 = vmatprep.subr.mxu0 0.0
          %1135 = vmatpush1.msra.mxu0 0.0
          %1136 = vmatprep.subr.mxu0 0.0
          %1137 = vmatpush1.msra.mxu0 0.0
          %1138 = vmatprep.subr.mxu0 0.0
          %1139 = vmatpush1.msra.mxu0 0.0
          %1140 = vmatprep.subr.mxu0 0.0
          %1141 = vmatpush1.msra.mxu0 0.0
          %1142 = vmatprep.subr.mxu0 0.0
          %1143 = vmatpush1.msra.mxu0 0.0
          %1144 = vmatprep.subr.mxu0 0.0
          %1145 = vmatpush1.msra.mxu0 0.0
          %1146 = vmatprep.subr.mxu0 0.0
          %1147 = vmatpush1.msra.mxu0 0.0
          %1148 = vmatprep.mubr.f32.mxu0 0.0
          %1149 = vmatmul.mubr.f32.gmra.mrb[0].mxu0 %v1082
          %v1150 = vpop.f32.mrb[0].mxu0
          %v1151 = vadd.f32 %v1080, %v1150
          %v1152 = vpop.f32.mrb[0].mxu0
          %1153 = vdwg.mxu0
          %1154 = vst [vmem:[#allocation13] sm:$0xff] %v1151
        $region68: #{tpu_custom_call.1} parent=43 // pred_fallthru
          _
        // Predicated region
        $region69: #{tpu_custom_call.1} parent=43 // pred_check
          %p1155 = pneg %p186
        $region70: #{tpu_custom_call.1} parent=43 // pred_check_branch
          %1157 = sbr.rel (%p1155) target = $region72
        $region71: #{tpu_custom_call.1} parent=43 // pred_region
          %s1159 = ssub.s32 128, 128
          %1160 = vsyncadd [#allocation7], %s1159
          %s1161 = smul.addr %s27, 128
          %s1162 = scalar_lea.hbm %s6, %s1161
          %s1164 = sshll.u32 [#allocation13], 4
          %s1165 = int_to_ptr.vmem [resolvable:$true] %s1164
          %1167 = dma.vmem_to_hbm [thread:$0]  %s1165, 128, %s1162, [#allocation7]
        $region72: #{tpu_custom_call.1} parent=43 // pred_fallthru
          _
        // Predicated region
        $region73: #{tpu_custom_call.1} parent=43 // pred_check
          %p1168 = pneg %p186
        $region74: #{tpu_custom_call.1} parent=43 // pred_check_branch
          %1170 = sbr.rel (%p1168) target = $region76
        $region75: #{tpu_custom_call.1} parent=43 // pred_region
          %1171 = dma.done [#allocation7], 128
        $region76: #{tpu_custom_call.1} parent=43 // pred_fallthru
          _
      $region44: #{tpu_custom_call.1} parent=5 // pred_fallthru
        _
      %p1172 = scmp.le.s32.totalorder 2, %s18
      // Predicated region
      $region77: #{tpu_custom_call.1} parent=5 // pred_check
        %p1173 = pneg %p1172
      $region78: #{tpu_custom_call.1} parent=5 // pred_check_branch
        %1175 = sbr.rel (%p1173) target = $region80
      $region79: #{tpu_custom_call.1} parent=5 // pred_region
        %s1176 = ssub.s32 %s18, 2
      $region80: #{tpu_custom_call.1} parent=5 // pred_fallthru
        _
    $region6: #{tpu_custom_call.1} parent=1 // loop_footer
      %s22 = sadd.s32 1, %s18
    $region7: #{tpu_custom_call.1} parent=1 // loop_footer_branch
      %17 = sbr.rel target = $region3
    $region8: #{tpu_custom_call.1} parent=1 // loop_exit
      _
    %1177 = vsyncpa [#allocation6], 1
    %s1178 = scalar_lea.sflag [#allocation6], 1
    %1179 = vsyncpa %s1178, 1
    %1180 = vsyncpa [#allocation9], 1
    %1181 = vsyncpa [#allocation12], 1
    %1182 = vsyncpa [#allocation7], 1
    %s1183 = scalar_lea.sflag [#allocation7], 1
    %1184 = vsyncpa %s1183, 1

</llo_original>
